<compile_context>
chip_gen: v7x
topology: tpu7x:2x2x1
jax: 0.10.0
libtpu: 0.0.40
codegen_flags: <defaults>
</compile_context>

<pallas_src>
import functools

import jax
import jax.numpy as jnp
from jax.experimental import pallas as pl
from jax.experimental.pallas import tpu as pltpu


def lstm_head_kernel(xp_ref, wstep_ref, b1_ref, fc1w_ref, fc1b_ref,
                     fc2w_ref, fc2b_ref, out_ref, hcat_ref,
                     *, mxu_dtype=jnp.float32):
    T, Bb, H4 = xp_ref.shape
    H = H4 // 4
    H3 = 3 * H

    # Fused per-step weight [[whh0, wih1],[0, whh1]] : (2H, 8H), cols [i,f,o,g].
    w_step = wstep_ref[...].astype(mxu_dtype)
    # Hoist the (1,4H)->(Bb,4H) bias broadcast out of the recurrent loop
    # (JAX does not CSE broadcasts).
    b1 = jnp.broadcast_to(b1_ref[...], (Bb, H4))

    def cell(gates, c_prev):
        # Packed gate order [i, f, o, g]: sigmoid gates are one contiguous slab.
        sig = jax.nn.sigmoid(gates[:, :H3])
        g = jnp.tanh(gates[:, H3:])
        i = sig[:, 0 * H:1 * H]
        f = sig[:, 1 * H:2 * H]
        o = sig[:, 2 * H:3 * H]
        c = f * c_prev + i * g
        h = o * jnp.tanh(c)
        return h, c

    zeros = jnp.zeros((Bb, H), jnp.float32)
    c0, c1 = zeros, zeros
    h1 = zeros
    g0_rec = jnp.zeros((Bb, H4), jnp.float32)            # h0(-1) @ whh0 == 0
    hcat_ref[...] = jnp.zeros((Bb, 2 * H), jnp.float32)  # packed [h0, h1] state

    # Static unroll (T is small and static); exactly ONE MXU launch per step
    # remains on the serial critical path.
    for t in range(T):
        # Layer 0: input projection precomputed outside the kernel.
        g0 = xp_ref[t] + g0_rec
        h0, c0 = cell(g0, c0)
        hcat_ref[:, 0:H] = h0                 # update packed state in place
        gg = jnp.dot(hcat_ref[...].astype(mxu_dtype), w_step,
                     preferred_element_type=jnp.float32)
        g0_rec = gg[:, :H4]                   # layer-0 recurrence for step t+1
        g1 = gg[:, H4:] + b1                  # layer-1 gates for step t
        h1, c1 = cell(g1, c1)
        hcat_ref[:, H:2 * H] = h1             # visible to step t+1

    # FC head on the last timestep: Linear -> ReLU -> (Dropout=id) -> Linear.
    z = jnp.maximum(
        jnp.dot(h1, fc1w_ref[...], preferred_element_type=jnp.float32)
        + fc1b_ref[...], 0.0)
    # fc2 has N=1: VPU multiply + XLU lane reduction, keep the MXU off the tail.
    out_ref[...] = (jnp.sum(z * fc2w_ref[...], axis=-1, keepdims=True)
                    + fc2b_ref[...])


def lstm_model_forward(x, packed, *, block_b=None, mxu_dtype=jnp.float32):
    """x: (B, T, D) batch_first like the PyTorch module. Returns (B, 1)."""
    (wih0, b0, w_step, b1, fc1w, fc1b, fc2w, fc2b) = packed
    B, T, D = x.shape
    H4 = b1.shape[1]
    H = H4 // 4

    # Hoisted layer-0 input projection (plain XLA): lane-dense (T, B, 4H),
    # time-major so the kernel reads xp_ref[t] per step.
    xp = (jnp.transpose(x, (1, 0, 2)).reshape(T * B, D) @ wih0 + b0
          ).reshape(T, B, H4)

    if block_b is None:
        if B % 512 == 0:
            block_b = 256            # fill MXU rows and keep >=2 programs
        elif B >= 16 and B % 16 == 0:
            block_b = B // 2         # >=2 programs so ("parallel",) can use both v7x TCs
        else:
            block_b = B              # small batches: single program
    assert B % block_b == 0 and (block_b == B or block_b % 8 == 0), \
        "block_b must divide B and be a multiple of 8 (or equal B)"
    grid = (B // block_b,)

    weights = (w_step, b1, fc1w, fc1b, fc2w, fc2b)

    def full_spec(a):
        # Whole array resident every grid step (weights / biases).
        return pl.BlockSpec(a.shape, lambda i: (0,) * a.ndim)

    in_specs = ([pl.BlockSpec((T, block_b, H4), lambda i: (0, i, 0))]
                + [full_spec(w) for w in weights])
    out_specs = pl.BlockSpec((block_b, 1), lambda i: (i, 0))

    # VMEM headroom only matters for very large block_b (double-buffered xp block).
    xp_block_bytes = T * block_b * H4 * 4
    vmem_limit = (2 * xp_block_bytes + (8 << 20)
                  if 2 * xp_block_bytes > (12 << 20) else None)

    kernel = functools.partial(lstm_head_kernel, mxu_dtype=mxu_dtype)

    return pl.pallas_call(
        kernel,
        out_shape=jax.ShapeDtypeStruct((B, 1), jnp.float32),
        grid=grid,
        in_specs=in_specs,
        out_specs=out_specs,
        scratch_shapes=[pltpu.VMEM((block_b, 2 * H), jnp.float32)],
        compiler_params=pltpu.CompilerParams(
            dimension_semantics=("parallel",),
            vmem_limit_bytes=vmem_limit),
    )(xp, *weights)


# ----------------------------- parameters --------------------------------- #

def init_raw_params(key, input_dim=32, hidden_dim=64):
    """PyTorch-layout parameters: weight_ih_l* (4H, in), weight_hh_l* (4H, H),
    biases (4H,), gate order [i, f, g, o]; fc weights (out, in)."""
    H = hidden_dim
    ks = jax.random.split(key, 12)
    s = 1.0 / jnp.sqrt(jnp.float32(H))

    def u(k, shape, scale):
        return jax.random.uniform(k, shape, jnp.float32, -scale, scale)

    wih0 = u(ks[0], (4 * H, input_dim), s)
    whh0 = u(ks[1], (4 * H, H), s)
    bih0 = u(ks[2], (4 * H,), s)
    bhh0 = u(ks[3], (4 * H,), s)
    wih1 = u(ks[4], (4 * H, H), s)
    whh1 = u(ks[5], (4 * H, H), s)
    bih1 = u(ks[6], (4 * H,), s)
    bhh1 = u(ks[7], (4 * H,), s)
    s1 = 1.0 / jnp.sqrt(jnp.float32(H))
    fc1w = u(ks[8], (32, H), s1)
    fc1b = u(ks[9], (32,), s1)
    s2 = 1.0 / jnp.sqrt(jnp.float32(32))
    fc2w = u(ks[10], (1, 32), s2)
    fc2b = u(ks[11], (1,), s2)
    return (wih0, whh0, bih0, bhh0, wih1, whh1, bih1, bhh1,
            fc1w, fc1b, fc2w, fc2b)


def pack_params(raw, hidden_dim):
    """Repack PyTorch-layout params for the kernel:
       - transpose to (in, out), combine b_ih + b_hh
       - reorder gate columns [i,f,g,o] -> [i,f,o,g] (sigmoid gates contiguous)
       - build the fused per-step weight W_step = [[whh0, wih1],[0, whh1]] (2H, 8H)."""
    (wih0, whh0, bih0, bhh0, wih1, whh1, bih1, bhh1,
     fc1w, fc1b, fc2w, fc2b) = raw
    H = hidden_dim
    perm = jnp.concatenate([jnp.arange(0, 2 * H),
                            jnp.arange(3 * H, 4 * H),
                            jnp.arange(2 * H, 3 * H)])

    def reorder(w):                 # w: (in, 4H), columns [i,f,g,o] -> [i,f,o,g]
        return w[:, perm]

    wih0_p = reorder(wih0.T)                                   # (D, 4H)  (used by XLA wrapper)
    b0_p = reorder((bih0 + bhh0)[None, :])                     # (1, 4H)  (folded into xp)
    top = jnp.concatenate([reorder(whh0.T), reorder(wih1.T)], axis=1)          # (H, 8H)
    bot = jnp.concatenate([jnp.zeros((H, 4 * H), jnp.float32),
                           reorder(whh1.T)], axis=1)                           # (H, 8H)
    w_step = jnp.concatenate([top, bot], axis=0)               # (2H, 8H)
    b1_p = reorder((bih1 + bhh1)[None, :])                     # (1, 4H)
    fc1w_p = fc1w.T                                            # (H, 32)
    fc1b_p = fc1b[None, :]                                     # (1, 32)
    fc2w_row = fc2w                                            # (1, 32) row form for VPU reduce
    fc2b_p = fc2b[None, :]                                     # (1, 1)
    return (wih0_p, b0_p, w_step, b1_p, fc1w_p, fc1b_p, fc2w_row, fc2b_p)


# ------------------------------ reference --------------------------------- #

def reference_forward(x, raw):
    """Pure-JAX reference in PyTorch layout/semantics (gate order i,f,g,o)."""
    (wih0, whh0, bih0, bhh0, wih1, whh1, bih1, bhh1,
     fc1w, fc1b, fc2w, fc2b) = raw
    B, T, D = x.shape
    H = whh0.shape[1]

    def cell(gates, c_prev):
        i = jax.nn.sigmoid(gates[:, 0 * H:1 * H])
        f = jax.nn.sigmoid(gates[:, 1 * H:2 * H])
        g = jnp.tanh(gates[:, 2 * H:3 * H])
        o = jax.nn.sigmoid(gates[:, 3 * H:4 * H])
        c = f * c_prev + i * g
        return o * jnp.tanh(c), c

    h0 = c0 = h1 = c1 = jnp.zeros((B, H), jnp.float32)
    for t in range(T):
        x_t = x[:, t, :]
        h0, c0 = cell(x_t @ wih0.T + h0 @ whh0.T + bih0 + bhh0, c0)
        h1, c1 = cell(h0 @ wih1.T + h1 @ whh1.T + bih1 + bhh1, c1)
    z = jnp.maximum(h1 @ fc1w.T + fc1b, 0.0)
    return z @ fc2w.T + fc2b


if __name__ == "__main__":
    T, D, H = 8, 32, 64   # seq_len=8, input_dim=32, hidden_dim=64, num_layers=2
    key = jax.random.PRNGKey(0)
    k_x1, k_x2, k_p = jax.random.split(key, 3)

    raw = init_raw_params(k_p, input_dim=D, hidden_dim=H)
    packed = pack_params(raw, hidden_dim=H)

    # Small batch: single program (grid=(1,)).
    B1 = 8
    x1 = jax.random.normal(k_x1, (B1, T, D), jnp.float32)
    out1 = jax.block_until_ready(lstm_model_forward(x1, packed))
    ref1 = reference_forward(x1, raw)
    assert out1.shape == (B1, 1), out1.shape
    assert jnp.allclose(out1, ref1, atol=1e-4, rtol=1e-4), "mismatch (B=8)"

    # Larger batch: exercises the batched grid / dual-TC-parallel path (grid=(2,)).
    B2 = 32
    x2 = jax.random.normal(k_x2, (B2, T, D), jnp.float32)
    out2 = jax.block_until_ready(lstm_model_forward(x2, packed))
    ref2 = reference_forward(x2, raw)
    assert out2.shape == (B2, 1), out2.shape
    assert jnp.allclose(out2, ref2, atol=1e-4, rtol=1e-4), "mismatch (B=32)"

    print("KERNEL_OK")
</pallas_src>

<mosaic_0001>
module attributes {stable_mosaic.version = 11 : i64} {
  func.func @lstm_head_kernel(%arg0: i32, %arg1: memref<8x8x256xf32, #tpu.memory_space<vmem>>, %arg2: memref<128x512xf32, #tpu.memory_space<vmem>>, %arg3: memref<1x256xf32, #tpu.memory_space<vmem>>, %arg4: memref<64x32xf32, #tpu.memory_space<vmem>>, %arg5: memref<1x32xf32, #tpu.memory_space<vmem>>, %arg6: memref<1x32xf32, #tpu.memory_space<vmem>>, %arg7: memref<1x1xf32, #tpu.memory_space<vmem>>, %arg8: memref<8x1xf32, #tpu.memory_space<vmem>>, %arg9: memref<8x128xf32, #tpu.memory_space<vmem>>) attributes {dimension_semantics = [#tpu.dimension_semantics<parallel>], iteration_bounds = array<i64: 1>, scalar_prefetch = 0 : i64, scratch_operands = 1 : i64, tpu.core_type = #tpu.core_type<tc>, window_params = [{transform_indices = @transform_0, window_bounds = array<i64: 8, 8, 256>}, {pipeline_mode = #tpu.pipeline_mode<synchronous>, transform_indices = @transform_1, window_bounds = array<i64: 128, 512>}, {pipeline_mode = #tpu.pipeline_mode<synchronous>, transform_indices = @transform_2, window_bounds = array<i64: 1, 256>}, {pipeline_mode = #tpu.pipeline_mode<synchronous>, transform_indices = @transform_3, window_bounds = array<i64: 64, 32>}, {pipeline_mode = #tpu.pipeline_mode<synchronous>, transform_indices = @transform_4, window_bounds = array<i64: 1, 32>}, {pipeline_mode = #tpu.pipeline_mode<synchronous>, transform_indices = @transform_5, window_bounds = array<i64: 1, 32>}, {pipeline_mode = #tpu.pipeline_mode<synchronous>, transform_indices = @transform_6, window_bounds = array<i64: 1, 1>}, {transform_indices = @transform_7, window_bounds = array<i64: 8, 1>}]} {
    %c0 = arith.constant 0 : index
    %c0_0 = arith.constant 0 : index
    %0 = vector.load %arg2[%c0, %c0_0] : memref<128x512xf32, #tpu.memory_space<vmem>>, vector<128x512xf32>
    %c0_1 = arith.constant 0 : index
    %c0_2 = arith.constant 0 : index
    %1 = vector.load %arg3[%c0_1, %c0_2] : memref<1x256xf32, #tpu.memory_space<vmem>>, vector<1x256xf32>
    %2 = vector.shape_cast %1 : vector<1x256xf32> to vector<1x256xf32>
    %3 = vector.broadcast %2 : vector<1x256xf32> to vector<8x256xf32>
    %cst = arith.constant 0.000000e+00 : f32
    %4 = vector.broadcast %cst : f32 to vector<8x64xf32>
    %cst_3 = arith.constant 0.000000e+00 : f32
    %5 = vector.broadcast %cst_3 : f32 to vector<8x256xf32>
    %cst_4 = arith.constant 0.000000e+00 : f32
    %6 = vector.broadcast %cst_4 : f32 to vector<8x128xf32>
    %c0_5 = arith.constant 0 : index
    %c0_6 = arith.constant 0 : index
    %7 = vector.load %arg9[%c0_5, %c0_6] : memref<8x128xf32, #tpu.memory_space<vmem>>, vector<8x128xf32>
    tpu.vector_store %arg9[%c0_5, %c0_6], %6 {strides = array<i32>} : memref<8x128xf32, #tpu.memory_space<vmem>>, vector<8x128xf32>,
    %c0_7 = arith.constant 0 : index
    %c0_8 = arith.constant 0 : index
    %c0_9 = arith.constant 0 : index
    %8 = vector.load %arg1[%c0_7, %c0_8, %c0_9] : memref<8x8x256xf32, #tpu.memory_space<vmem>>, vector<1x8x256xf32>
    %9 = vector.shape_cast %8 : vector<1x8x256xf32> to vector<8x256xf32>
    %10 = arith.addf %9, %5 : vector<8x256xf32>
    %11 = vector.extract_strided_slice %10 {offsets = [0, 0], sizes = [8, 192], strides = [1, 1]} : vector<8x256xf32> to vector<8x192xf32>
    %12 = arith.negf %11 : vector<8x192xf32>
    %13 = math.exp %12 : vector<8x192xf32>
    %cst_10 = arith.constant 1.000000e+00 : f32
    %14 = vector.broadcast %cst_10 : f32 to vector<8x192xf32>
    %15 = arith.addf %14, %13 : vector<8x192xf32>
    %16 = arith.divf %14, %15 : vector<8x192xf32>
    %17 = vector.extract_strided_slice %10 {offsets = [0, 192], sizes = [8, 64], strides = [1, 1]} : vector<8x256xf32> to vector<8x64xf32>
    %18 = math.tanh %17 : vector<8x64xf32>
    %19 = vector.extract_strided_slice %16 {offsets = [0, 0], sizes = [8, 64], strides = [1, 1]} : vector<8x192xf32> to vector<8x64xf32>
    %20 = vector.extract_strided_slice %16 {offsets = [0, 64], sizes = [8, 64], strides = [1, 1]} : vector<8x192xf32> to vector<8x64xf32>
    %21 = vector.extract_strided_slice %16 {offsets = [0, 128], sizes = [8, 64], strides = [1, 1]} : vector<8x192xf32> to vector<8x64xf32>
    %22 = arith.mulf %20, %4 : vector<8x64xf32>
    %23 = arith.mulf %19, %18 : vector<8x64xf32>
    %24 = arith.addf %22, %23 : vector<8x64xf32>
    %25 = math.tanh %24 : vector<8x64xf32>
    %26 = arith.mulf %21, %25 : vector<8x64xf32>
    %c0_11 = arith.constant 0 : index
    %c0_12 = arith.constant 0 : index
    %27 = vector.load %arg9[%c0_11, %c0_12] : memref<8x128xf32, #tpu.memory_space<vmem>>, vector<8x64xf32>
    tpu.vector_store %arg9[%c0_11, %c0_12], %26 {strides = array<i32>} : memref<8x128xf32, #tpu.memory_space<vmem>>, vector<8x64xf32>,
    %c0_13 = arith.constant 0 : index
    %c0_14 = arith.constant 0 : index
    %28 = vector.load %arg9[%c0_13, %c0_14] : memref<8x128xf32, #tpu.memory_space<vmem>>, vector<8x128xf32>
    %cst_15 = arith.constant dense<0.000000e+00> : vector<8x512xf32>
    %29 = tpu.matmul %28, %0, %cst_15 {dimension_numbers = #tpu.dot_dimension_numbers<[1], [0], [0], [1], [0, 0, 1, 1], [], []>} : vector<8x128xf32>, vector<128x512xf32>, vector<8x512xf32> -> vector<8x512xf32>
    %30 = vector.extract_strided_slice %29 {offsets = [0, 0], sizes = [8, 256], strides = [1, 1]} : vector<8x512xf32> to vector<8x256xf32>
    %31 = vector.extract_strided_slice %29 {offsets = [0, 256], sizes = [8, 256], strides = [1, 1]} : vector<8x512xf32> to vector<8x256xf32>
    %32 = arith.addf %31, %3 : vector<8x256xf32>
    %33 = vector.extract_strided_slice %32 {offsets = [0, 0], sizes = [8, 192], strides = [1, 1]} : vector<8x256xf32> to vector<8x192xf32>
    %34 = arith.negf %33 : vector<8x192xf32>
    %35 = math.exp %34 : vector<8x192xf32>
    %cst_16 = arith.constant 1.000000e+00 : f32
    %36 = vector.broadcast %cst_16 : f32 to vector<8x192xf32>
    %37 = arith.addf %36, %35 : vector<8x192xf32>
    %38 = arith.divf %36, %37 : vector<8x192xf32>
    %39 = vector.extract_strided_slice %32 {offsets = [0, 192], sizes = [8, 64], strides = [1, 1]} : vector<8x256xf32> to vector<8x64xf32>
    %40 = math.tanh %39 : vector<8x64xf32>
    %41 = vector.extract_strided_slice %38 {offsets = [0, 0], sizes = [8, 64], strides = [1, 1]} : vector<8x192xf32> to vector<8x64xf32>
    %42 = vector.extract_strided_slice %38 {offsets = [0, 64], sizes = [8, 64], strides = [1, 1]} : vector<8x192xf32> to vector<8x64xf32>
    %43 = vector.extract_strided_slice %38 {offsets = [0, 128], sizes = [8, 64], strides = [1, 1]} : vector<8x192xf32> to vector<8x64xf32>
    %44 = arith.mulf %42, %4 : vector<8x64xf32>
    %45 = arith.mulf %41, %40 : vector<8x64xf32>
    %46 = arith.addf %44, %45 : vector<8x64xf32>
    %47 = math.tanh %46 : vector<8x64xf32>
    %48 = arith.mulf %43, %47 : vector<8x64xf32>
    %c0_17 = arith.constant 0 : index
    %c64 = arith.constant 64 : index
    %49 = vector.load %arg9[%c0_17, %c64] : memref<8x128xf32, #tpu.memory_space<vmem>>, vector<8x64xf32>
    tpu.vector_store %arg9[%c0_17, %c64], %48 {strides = array<i32>} : memref<8x128xf32, #tpu.memory_space<vmem>>, vector<8x64xf32>,
    %c1 = arith.constant 1 : index
    %c0_18 = arith.constant 0 : index
    %c0_19 = arith.constant 0 : index
    %50 = vector.load %arg1[%c1, %c0_18, %c0_19] : memref<8x8x256xf32, #tpu.memory_space<vmem>>, vector<1x8x256xf32>
    %51 = vector.shape_cast %50 : vector<1x8x256xf32> to vector<8x256xf32>
    %52 = arith.addf %51, %30 : vector<8x256xf32>
    %53 = vector.extract_strided_slice %52 {offsets = [0, 0], sizes = [8, 192], strides = [1, 1]} : vector<8x256xf32> to vector<8x192xf32>
    %54 = arith.negf %53 : vector<8x192xf32>
    %55 = math.exp %54 : vector<8x192xf32>
    %cst_20 = arith.constant 1.000000e+00 : f32
    %56 = vector.broadcast %cst_20 : f32 to vector<8x192xf32>
    %57 = arith.addf %56, %55 : vector<8x192xf32>
    %58 = arith.divf %56, %57 : vector<8x192xf32>
    %59 = vector.extract_strided_slice %52 {offsets = [0, 192], sizes = [8, 64], strides = [1, 1]} : vector<8x256xf32> to vector<8x64xf32>
    %60 = math.tanh %59 : vector<8x64xf32>
    %61 = vector.extract_strided_slice %58 {offsets = [0, 0], sizes = [8, 64], strides = [1, 1]} : vector<8x192xf32> to vector<8x64xf32>
    %62 = vector.extract_strided_slice %58 {offsets = [0, 64], sizes = [8, 64], strides = [1, 1]} : vector<8x192xf32> to vector<8x64xf32>
    %63 = vector.extract_strided_slice %58 {offsets = [0, 128], sizes = [8, 64], strides = [1, 1]} : vector<8x192xf32> to vector<8x64xf32>
    %64 = arith.mulf %62, %24 : vector<8x64xf32>
    %65 = arith.mulf %61, %60 : vector<8x64xf32>
    %66 = arith.addf %64, %65 : vector<8x64xf32>
    %67 = math.tanh %66 : vector<8x64xf32>
    %68 = arith.mulf %63, %67 : vector<8x64xf32>
    %c0_21 = arith.constant 0 : index
    %c0_22 = arith.constant 0 : index
    %69 = vector.load %arg9[%c0_21, %c0_22] : memref<8x128xf32, #tpu.memory_space<vmem>>, vector<8x64xf32>
    tpu.vector_store %arg9[%c0_21, %c0_22], %68 {strides = array<i32>} : memref<8x128xf32, #tpu.memory_space<vmem>>, vector<8x64xf32>,
    %c0_23 = arith.constant 0 : index
    %c0_24 = arith.constant 0 : index
    %70 = vector.load %arg9[%c0_23, %c0_24] : memref<8x128xf32, #tpu.memory_space<vmem>>, vector<8x128xf32>
    %cst_25 = arith.constant dense<0.000000e+00> : vector<8x512xf32>
    %71 = tpu.matmul %70, %0, %cst_25 {dimension_numbers = #tpu.dot_dimension_numbers<[1], [0], [0], [1], [0, 0, 1, 1], [], []>} : vector<8x128xf32>, vector<128x512xf32>, vector<8x512xf32> -> vector<8x512xf32>
    %72 = vector.extract_strided_slice %71 {offsets = [0, 0], sizes = [8, 256], strides = [1, 1]} : vector<8x512xf32> to vector<8x256xf32>
    %73 = vector.extract_strided_slice %71 {offsets = [0, 256], sizes = [8, 256], strides = [1, 1]} : vector<8x512xf32> to vector<8x256xf32>
    %74 = arith.addf %73, %3 : vector<8x256xf32>
    %75 = vector.extract_strided_slice %74 {offsets = [0, 0], sizes = [8, 192], strides = [1, 1]} : vector<8x256xf32> to vector<8x192xf32>
    %76 = arith.negf %75 : vector<8x192xf32>
    %77 = math.exp %76 : vector<8x192xf32>
    %cst_26 = arith.constant 1.000000e+00 : f32
    %78 = vector.broadcast %cst_26 : f32 to vector<8x192xf32>
    %79 = arith.addf %78, %77 : vector<8x192xf32>
    %80 = arith.divf %78, %79 : vector<8x192xf32>
    %81 = vector.extract_strided_slice %74 {offsets = [0, 192], sizes = [8, 64], strides = [1, 1]} : vector<8x256xf32> to vector<8x64xf32>
    %82 = math.tanh %81 : vector<8x64xf32>
    %83 = vector.extract_strided_slice %80 {offsets = [0, 0], sizes = [8, 64], strides = [1, 1]} : vector<8x192xf32> to vector<8x64xf32>
    %84 = vector.extract_strided_slice %80 {offsets = [0, 64], sizes = [8, 64], strides = [1, 1]} : vector<8x192xf32> to vector<8x64xf32>
    %85 = vector.extract_strided_slice %80 {offsets = [0, 128], sizes = [8, 64], strides = [1, 1]} : vector<8x192xf32> to vector<8x64xf32>
    %86 = arith.mulf %84, %46 : vector<8x64xf32>
    %87 = arith.mulf %83, %82 : vector<8x64xf32>
    %88 = arith.addf %86, %87 : vector<8x64xf32>
    %89 = math.tanh %88 : vector<8x64xf32>
    %90 = arith.mulf %85, %89 : vector<8x64xf32>
    %c0_27 = arith.constant 0 : index
    %c64_28 = arith.constant 64 : index
    %91 = vector.load %arg9[%c0_27, %c64_28] : memref<8x128xf32, #tpu.memory_space<vmem>>, vector<8x64xf32>
    tpu.vector_store %arg9[%c0_27, %c64_28], %90 {strides = array<i32>} : memref<8x128xf32, #tpu.memory_space<vmem>>, vector<8x64xf32>,
    %c2 = arith.constant 2 : index
    %c0_29 = arith.constant 0 : index
    %c0_30 = arith.constant 0 : index
    %92 = vector.load %arg1[%c2, %c0_29, %c0_30] : memref<8x8x256xf32, #tpu.memory_space<vmem>>, vector<1x8x256xf32>
    %93 = vector.shape_cast %92 : vector<1x8x256xf32> to vector<8x256xf32>
    %94 = arith.addf %93, %72 : vector<8x256xf32>
    %95 = vector.extract_strided_slice %94 {offsets = [0, 0], sizes = [8, 192], strides = [1, 1]} : vector<8x256xf32> to vector<8x192xf32>
    %96 = arith.negf %95 : vector<8x192xf32>
    %97 = math.exp %96 : vector<8x192xf32>
    %cst_31 = arith.constant 1.000000e+00 : f32
    %98 = vector.broadcast %cst_31 : f32 to vector<8x192xf32>
    %99 = arith.addf %98, %97 : vector<8x192xf32>
    %100 = arith.divf %98, %99 : vector<8x192xf32>
    %101 = vector.extract_strided_slice %94 {offsets = [0, 192], sizes = [8, 64], strides = [1, 1]} : vector<8x256xf32> to vector<8x64xf32>
    %102 = math.tanh %101 : vector<8x64xf32>
    %103 = vector.extract_strided_slice %100 {offsets = [0, 0], sizes = [8, 64], strides = [1, 1]} : vector<8x192xf32> to vector<8x64xf32>
    %104 = vector.extract_strided_slice %100 {offsets = [0, 64], sizes = [8, 64], strides = [1, 1]} : vector<8x192xf32> to vector<8x64xf32>
    %105 = vector.extract_strided_slice %100 {offsets = [0, 128], sizes = [8, 64], strides = [1, 1]} : vector<8x192xf32> to vector<8x64xf32>
    %106 = arith.mulf %104, %66 : vector<8x64xf32>
    %107 = arith.mulf %103, %102 : vector<8x64xf32>
    %108 = arith.addf %106, %107 : vector<8x64xf32>
    %109 = math.tanh %108 : vector<8x64xf32>
    %110 = arith.mulf %105, %109 : vector<8x64xf32>
    %c0_32 = arith.constant 0 : index
    %c0_33 = arith.constant 0 : index
    %111 = vector.load %arg9[%c0_32, %c0_33] : memref<8x128xf32, #tpu.memory_space<vmem>>, vector<8x64xf32>
    tpu.vector_store %arg9[%c0_32, %c0_33], %110 {strides = array<i32>} : memref<8x128xf32, #tpu.memory_space<vmem>>, vector<8x64xf32>,
    %c0_34 = arith.constant 0 : index
    %c0_35 = arith.constant 0 : index
    %112 = vector.load %arg9[%c0_34, %c0_35] : memref<8x128xf32, #tpu.memory_space<vmem>>, vector<8x128xf32>
    %cst_36 = arith.constant dense<0.000000e+00> : vector<8x512xf32>
    %113 = tpu.matmul %112, %0, %cst_36 {dimension_numbers = #tpu.dot_dimension_numbers<[1], [0], [0], [1], [0, 0, 1, 1], [], []>} : vector<8x128xf32>, vector<128x512xf32>, vector<8x512xf32> -> vector<8x512xf32>
    %114 = vector.extract_strided_slice %113 {offsets = [0, 0], sizes = [8, 256], strides = [1, 1]} : vector<8x512xf32> to vector<8x256xf32>
    %115 = vector.extract_strided_slice %113 {offsets = [0, 256], sizes = [8, 256], strides = [1, 1]} : vector<8x512xf32> to vector<8x256xf32>
    %116 = arith.addf %115, %3 : vector<8x256xf32>
    %117 = vector.extract_strided_slice %116 {offsets = [0, 0], sizes = [8, 192], strides = [1, 1]} : vector<8x256xf32> to vector<8x192xf32>
    %118 = arith.negf %117 : vector<8x192xf32>
    %119 = math.exp %118 : vector<8x192xf32>
    %cst_37 = arith.constant 1.000000e+00 : f32
    %120 = vector.broadcast %cst_37 : f32 to vector<8x192xf32>
    %121 = arith.addf %120, %119 : vector<8x192xf32>
    %122 = arith.divf %120, %121 : vector<8x192xf32>
    %123 = vector.extract_strided_slice %116 {offsets = [0, 192], sizes = [8, 64], strides = [1, 1]} : vector<8x256xf32> to vector<8x64xf32>
    %124 = math.tanh %123 : vector<8x64xf32>
    %125 = vector.extract_strided_slice %122 {offsets = [0, 0], sizes = [8, 64], strides = [1, 1]} : vector<8x192xf32> to vector<8x64xf32>
    %126 = vector.extract_strided_slice %122 {offsets = [0, 64], sizes = [8, 64], strides = [1, 1]} : vector<8x192xf32> to vector<8x64xf32>
    %127 = vector.extract_strided_slice %122 {offsets = [0, 128], sizes = [8, 64], strides = [1, 1]} : vector<8x192xf32> to vector<8x64xf32>
    %128 = arith.mulf %126, %88 : vector<8x64xf32>
    %129 = arith.mulf %125, %124 : vector<8x64xf32>
    %130 = arith.addf %128, %129 : vector<8x64xf32>
    %131 = math.tanh %130 : vector<8x64xf32>
    %132 = arith.mulf %127, %131 : vector<8x64xf32>
    %c0_38 = arith.constant 0 : index
    %c64_39 = arith.constant 64 : index
    %133 = vector.load %arg9[%c0_38, %c64_39] : memref<8x128xf32, #tpu.memory_space<vmem>>, vector<8x64xf32>
    tpu.vector_store %arg9[%c0_38, %c64_39], %132 {strides = array<i32>} : memref<8x128xf32, #tpu.memory_space<vmem>>, vector<8x64xf32>,
    %c3 = arith.constant 3 : index
    %c0_40 = arith.constant 0 : index
    %c0_41 = arith.constant 0 : index
    %134 = vector.load %arg1[%c3, %c0_40, %c0_41] : memref<8x8x256xf32, #tpu.memory_space<vmem>>, vector<1x8x256xf32>
    %135 = vector.shape_cast %134 : vector<1x8x256xf32> to vector<8x256xf32>
    %136 = arith.addf %135, %114 : vector<8x256xf32>
    %137 = vector.extract_strided_slice %136 {offsets = [0, 0], sizes = [8, 192], strides = [1, 1]} : vector<8x256xf32> to vector<8x192xf32>
    %138 = arith.negf %137 : vector<8x192xf32>
    %139 = math.exp %138 : vector<8x192xf32>
    %cst_42 = arith.constant 1.000000e+00 : f32
    %140 = vector.broadcast %cst_42 : f32 to vector<8x192xf32>
    %141 = arith.addf %140, %139 : vector<8x192xf32>
    %142 = arith.divf %140, %141 : vector<8x192xf32>
    %143 = vector.extract_strided_slice %136 {offsets = [0, 192], sizes = [8, 64], strides = [1, 1]} : vector<8x256xf32> to vector<8x64xf32>
    %144 = math.tanh %143 : vector<8x64xf32>
    %145 = vector.extract_strided_slice %142 {offsets = [0, 0], sizes = [8, 64], strides = [1, 1]} : vector<8x192xf32> to vector<8x64xf32>
    %146 = vector.extract_strided_slice %142 {offsets = [0, 64], sizes = [8, 64], strides = [1, 1]} : vector<8x192xf32> to vector<8x64xf32>
    %147 = vector.extract_strided_slice %142 {offsets = [0, 128], sizes = [8, 64], strides = [1, 1]} : vector<8x192xf32> to vector<8x64xf32>
    %148 = arith.mulf %146, %108 : vector<8x64xf32>
    %149 = arith.mulf %145, %144 : vector<8x64xf32>
    %150 = arith.addf %148, %149 : vector<8x64xf32>
    %151 = math.tanh %150 : vector<8x64xf32>
    %152 = arith.mulf %147, %151 : vector<8x64xf32>
    %c0_43 = arith.constant 0 : index
    %c0_44 = arith.constant 0 : index
    %153 = vector.load %arg9[%c0_43, %c0_44] : memref<8x128xf32, #tpu.memory_space<vmem>>, vector<8x64xf32>
    tpu.vector_store %arg9[%c0_43, %c0_44], %152 {strides = array<i32>} : memref<8x128xf32, #tpu.memory_space<vmem>>, vector<8x64xf32>,
    %c0_45 = arith.constant 0 : index
    %c0_46 = arith.constant 0 : index
    %154 = vector.load %arg9[%c0_45, %c0_46] : memref<8x128xf32, #tpu.memory_space<vmem>>, vector<8x128xf32>
    %cst_47 = arith.constant dense<0.000000e+00> : vector<8x512xf32>
    %155 = tpu.matmul %154, %0, %cst_47 {dimension_numbers = #tpu.dot_dimension_numbers<[1], [0], [0], [1], [0, 0, 1, 1], [], []>} : vector<8x128xf32>, vector<128x512xf32>, vector<8x512xf32> -> vector<8x512xf32>
    %156 = vector.extract_strided_slice %155 {offsets = [0, 0], sizes = [8, 256], strides = [1, 1]} : vector<8x512xf32> to vector<8x256xf32>
    %157 = vector.extract_strided_slice %155 {offsets = [0, 256], sizes = [8, 256], strides = [1, 1]} : vector<8x512xf32> to vector<8x256xf32>
    %158 = arith.addf %157, %3 : vector<8x256xf32>
    %159 = vector.extract_strided_slice %158 {offsets = [0, 0], sizes = [8, 192], strides = [1, 1]} : vector<8x256xf32> to vector<8x192xf32>
    %160 = arith.negf %159 : vector<8x192xf32>
    %161 = math.exp %160 : vector<8x192xf32>
    %cst_48 = arith.constant 1.000000e+00 : f32
    %162 = vector.broadcast %cst_48 : f32 to vector<8x192xf32>
    %163 = arith.addf %162, %161 : vector<8x192xf32>
    %164 = arith.divf %162, %163 : vector<8x192xf32>
    %165 = vector.extract_strided_slice %158 {offsets = [0, 192], sizes = [8, 64], strides = [1, 1]} : vector<8x256xf32> to vector<8x64xf32>
    %166 = math.tanh %165 : vector<8x64xf32>
    %167 = vector.extract_strided_slice %164 {offsets = [0, 0], sizes = [8, 64], strides = [1, 1]} : vector<8x192xf32> to vector<8x64xf32>
    %168 = vector.extract_strided_slice %164 {offsets = [0, 64], sizes = [8, 64], strides = [1, 1]} : vector<8x192xf32> to vector<8x64xf32>
    %169 = vector.extract_strided_slice %164 {offsets = [0, 128], sizes = [8, 64], strides = [1, 1]} : vector<8x192xf32> to vector<8x64xf32>
    %170 = arith.mulf %168, %130 : vector<8x64xf32>
    %171 = arith.mulf %167, %166 : vector<8x64xf32>
    %172 = arith.addf %170, %171 : vector<8x64xf32>
    %173 = math.tanh %172 : vector<8x64xf32>
    %174 = arith.mulf %169, %173 : vector<8x64xf32>
    %c0_49 = arith.constant 0 : index
    %c64_50 = arith.constant 64 : index
    %175 = vector.load %arg9[%c0_49, %c64_50] : memref<8x128xf32, #tpu.memory_space<vmem>>, vector<8x64xf32>
    tpu.vector_store %arg9[%c0_49, %c64_50], %174 {strides = array<i32>} : memref<8x128xf32, #tpu.memory_space<vmem>>, vector<8x64xf32>,
    %c4 = arith.constant 4 : index
    %c0_51 = arith.constant 0 : index
    %c0_52 = arith.constant 0 : index
    %176 = vector.load %arg1[%c4, %c0_51, %c0_52] : memref<8x8x256xf32, #tpu.memory_space<vmem>>, vector<1x8x256xf32>
    %177 = vector.shape_cast %176 : vector<1x8x256xf32> to vector<8x256xf32>
    %178 = arith.addf %177, %156 : vector<8x256xf32>
    %179 = vector.extract_strided_slice %178 {offsets = [0, 0], sizes = [8, 192], strides = [1, 1]} : vector<8x256xf32> to vector<8x192xf32>
    %180 = arith.negf %179 : vector<8x192xf32>
    %181 = math.exp %180 : vector<8x192xf32>
    %cst_53 = arith.constant 1.000000e+00 : f32
    %182 = vector.broadcast %cst_53 : f32 to vector<8x192xf32>
    %183 = arith.addf %182, %181 : vector<8x192xf32>
    %184 = arith.divf %182, %183 : vector<8x192xf32>
    %185 = vector.extract_strided_slice %178 {offsets = [0, 192], sizes = [8, 64], strides = [1, 1]} : vector<8x256xf32> to vector<8x64xf32>
    %186 = math.tanh %185 : vector<8x64xf32>
    %187 = vector.extract_strided_slice %184 {offsets = [0, 0], sizes = [8, 64], strides = [1, 1]} : vector<8x192xf32> to vector<8x64xf32>
    %188 = vector.extract_strided_slice %184 {offsets = [0, 64], sizes = [8, 64], strides = [1, 1]} : vector<8x192xf32> to vector<8x64xf32>
    %189 = vector.extract_strided_slice %184 {offsets = [0, 128], sizes = [8, 64], strides = [1, 1]} : vector<8x192xf32> to vector<8x64xf32>
    %190 = arith.mulf %188, %150 : vector<8x64xf32>
    %191 = arith.mulf %187, %186 : vector<8x64xf32>
    %192 = arith.addf %190, %191 : vector<8x64xf32>
    %193 = math.tanh %192 : vector<8x64xf32>
    %194 = arith.mulf %189, %193 : vector<8x64xf32>
    %c0_54 = arith.constant 0 : index
    %c0_55 = arith.constant 0 : index
    %195 = vector.load %arg9[%c0_54, %c0_55] : memref<8x128xf32, #tpu.memory_space<vmem>>, vector<8x64xf32>
    tpu.vector_store %arg9[%c0_54, %c0_55], %194 {strides = array<i32>} : memref<8x128xf32, #tpu.memory_space<vmem>>, vector<8x64xf32>,
    %c0_56 = arith.constant 0 : index
    %c0_57 = arith.constant 0 : index
    %196 = vector.load %arg9[%c0_56, %c0_57] : memref<8x128xf32, #tpu.memory_space<vmem>>, vector<8x128xf32>
    %cst_58 = arith.constant dense<0.000000e+00> : vector<8x512xf32>
    %197 = tpu.matmul %196, %0, %cst_58 {dimension_numbers = #tpu.dot_dimension_numbers<[1], [0], [0], [1], [0, 0, 1, 1], [], []>} : vector<8x128xf32>, vector<128x512xf32>, vector<8x512xf32> -> vector<8x512xf32>
    %198 = vector.extract_strided_slice %197 {offsets = [0, 0], sizes = [8, 256], strides = [1, 1]} : vector<8x512xf32> to vector<8x256xf32>
    %199 = vector.extract_strided_slice %197 {offsets = [0, 256], sizes = [8, 256], strides = [1, 1]} : vector<8x512xf32> to vector<8x256xf32>
    %200 = arith.addf %199, %3 : vector<8x256xf32>
    %201 = vector.extract_strided_slice %200 {offsets = [0, 0], sizes = [8, 192], strides = [1, 1]} : vector<8x256xf32> to vector<8x192xf32>
    %202 = arith.negf %201 : vector<8x192xf32>
    %203 = math.exp %202 : vector<8x192xf32>
    %cst_59 = arith.constant 1.000000e+00 : f32
    %204 = vector.broadcast %cst_59 : f32 to vector<8x192xf32>
    %205 = arith.addf %204, %203 : vector<8x192xf32>
    %206 = arith.divf %204, %205 : vector<8x192xf32>
    %207 = vector.extract_strided_slice %200 {offsets = [0, 192], sizes = [8, 64], strides = [1, 1]} : vector<8x256xf32> to vector<8x64xf32>
    %208 = math.tanh %207 : vector<8x64xf32>
    %209 = vector.extract_strided_slice %206 {offsets = [0, 0], sizes = [8, 64], strides = [1, 1]} : vector<8x192xf32> to vector<8x64xf32>
    %210 = vector.extract_strided_slice %206 {offsets = [0, 64], sizes = [8, 64], strides = [1, 1]} : vector<8x192xf32> to vector<8x64xf32>
    %211 = vector.extract_strided_slice %206 {offsets = [0, 128], sizes = [8, 64], strides = [1, 1]} : vector<8x192xf32> to vector<8x64xf32>
    %212 = arith.mulf %210, %172 : vector<8x64xf32>
    %213 = arith.mulf %209, %208 : vector<8x64xf32>
    %214 = arith.addf %212, %213 : vector<8x64xf32>
    %215 = math.tanh %214 : vector<8x64xf32>
    %216 = arith.mulf %211, %215 : vector<8x64xf32>
    %c0_60 = arith.constant 0 : index
    %c64_61 = arith.constant 64 : index
    %217 = vector.load %arg9[%c0_60, %c64_61] : memref<8x128xf32, #tpu.memory_space<vmem>>, vector<8x64xf32>
    tpu.vector_store %arg9[%c0_60, %c64_61], %216 {strides = array<i32>} : memref<8x128xf32, #tpu.memory_space<vmem>>, vector<8x64xf32>,
    %c5 = arith.constant 5 : index
    %c0_62 = arith.constant 0 : index
    %c0_63 = arith.constant 0 : index
    %218 = vector.load %arg1[%c5, %c0_62, %c0_63] : memref<8x8x256xf32, #tpu.memory_space<vmem>>, vector<1x8x256xf32>
    %219 = vector.shape_cast %218 : vector<1x8x256xf32> to vector<8x256xf32>
    %220 = arith.addf %219, %198 : vector<8x256xf32>
    %221 = vector.extract_strided_slice %220 {offsets = [0, 0], sizes = [8, 192], strides = [1, 1]} : vector<8x256xf32> to vector<8x192xf32>
    %222 = arith.negf %221 : vector<8x192xf32>
    %223 = math.exp %222 : vector<8x192xf32>
    %cst_64 = arith.constant 1.000000e+00 : f32
    %224 = vector.broadcast %cst_64 : f32 to vector<8x192xf32>
    %225 = arith.addf %224, %223 : vector<8x192xf32>
    %226 = arith.divf %224, %225 : vector<8x192xf32>
    %227 = vector.extract_strided_slice %220 {offsets = [0, 192], sizes = [8, 64], strides = [1, 1]} : vector<8x256xf32> to vector<8x64xf32>
    %228 = math.tanh %227 : vector<8x64xf32>
    %229 = vector.extract_strided_slice %226 {offsets = [0, 0], sizes = [8, 64], strides = [1, 1]} : vector<8x192xf32> to vector<8x64xf32>
    %230 = vector.extract_strided_slice %226 {offsets = [0, 64], sizes = [8, 64], strides = [1, 1]} : vector<8x192xf32> to vector<8x64xf32>
    %231 = vector.extract_strided_slice %226 {offsets = [0, 128], sizes = [8, 64], strides = [1, 1]} : vector<8x192xf32> to vector<8x64xf32>
    %232 = arith.mulf %230, %192 : vector<8x64xf32>
    %233 = arith.mulf %229, %228 : vector<8x64xf32>
    %234 = arith.addf %232, %233 : vector<8x64xf32>
    %235 = math.tanh %234 : vector<8x64xf32>
    %236 = arith.mulf %231, %235 : vector<8x64xf32>
    %c0_65 = arith.constant 0 : index
    %c0_66 = arith.constant 0 : index
    %237 = vector.load %arg9[%c0_65, %c0_66] : memref<8x128xf32, #tpu.memory_space<vmem>>, vector<8x64xf32>
    tpu.vector_store %arg9[%c0_65, %c0_66], %236 {strides = array<i32>} : memref<8x128xf32, #tpu.memory_space<vmem>>, vector<8x64xf32>,
    %c0_67 = arith.constant 0 : index
    %c0_68 = arith.constant 0 : index
    %238 = vector.load %arg9[%c0_67, %c0_68] : memref<8x128xf32, #tpu.memory_space<vmem>>, vector<8x128xf32>
    %cst_69 = arith.constant dense<0.000000e+00> : vector<8x512xf32>
    %239 = tpu.matmul %238, %0, %cst_69 {dimension_numbers = #tpu.dot_dimension_numbers<[1], [0], [0], [1], [0, 0, 1, 1], [], []>} : vector<8x128xf32>, vector<128x512xf32>, vector<8x512xf32> -> vector<8x512xf32>
    %240 = vector.extract_strided_slice %239 {offsets = [0, 0], sizes = [8, 256], strides = [1, 1]} : vector<8x512xf32> to vector<8x256xf32>
    %241 = vector.extract_strided_slice %239 {offsets = [0, 256], sizes = [8, 256], strides = [1, 1]} : vector<8x512xf32> to vector<8x256xf32>
    %242 = arith.addf %241, %3 : vector<8x256xf32>
    %243 = vector.extract_strided_slice %242 {offsets = [0, 0], sizes = [8, 192], strides = [1, 1]} : vector<8x256xf32> to vector<8x192xf32>
    %244 = arith.negf %243 : vector<8x192xf32>
    %245 = math.exp %244 : vector<8x192xf32>
    %cst_70 = arith.constant 1.000000e+00 : f32
    %246 = vector.broadcast %cst_70 : f32 to vector<8x192xf32>
    %247 = arith.addf %246, %245 : vector<8x192xf32>
    %248 = arith.divf %246, %247 : vector<8x192xf32>
    %249 = vector.extract_strided_slice %242 {offsets = [0, 192], sizes = [8, 64], strides = [1, 1]} : vector<8x256xf32> to vector<8x64xf32>
    %250 = math.tanh %249 : vector<8x64xf32>
    %251 = vector.extract_strided_slice %248 {offsets = [0, 0], sizes = [8, 64], strides = [1, 1]} : vector<8x192xf32> to vector<8x64xf32>
    %252 = vector.extract_strided_slice %248 {offsets = [0, 64], sizes = [8, 64], strides = [1, 1]} : vector<8x192xf32> to vector<8x64xf32>
    %253 = vector.extract_strided_slice %248 {offsets = [0, 128], sizes = [8, 64], strides = [1, 1]} : vector<8x192xf32> to vector<8x64xf32>
    %254 = arith.mulf %252, %214 : vector<8x64xf32>
    %255 = arith.mulf %251, %250 : vector<8x64xf32>
    %256 = arith.addf %254, %255 : vector<8x64xf32>
    %257 = math.tanh %256 : vector<8x64xf32>
    %258 = arith.mulf %253, %257 : vector<8x64xf32>
    %c0_71 = arith.constant 0 : index
    %c64_72 = arith.constant 64 : index
    %259 = vector.load %arg9[%c0_71, %c64_72] : memref<8x128xf32, #tpu.memory_space<vmem>>, vector<8x64xf32>
    tpu.vector_store %arg9[%c0_71, %c64_72], %258 {strides = array<i32>} : memref<8x128xf32, #tpu.memory_space<vmem>>, vector<8x64xf32>,
    %c6 = arith.constant 6 : index
    %c0_73 = arith.constant 0 : index
    %c0_74 = arith.constant 0 : index
    %260 = vector.load %arg1[%c6, %c0_73, %c0_74] : memref<8x8x256xf32, #tpu.memory_space<vmem>>, vector<1x8x256xf32>
    %261 = vector.shape_cast %260 : vector<1x8x256xf32> to vector<8x256xf32>
    %262 = arith.addf %261, %240 : vector<8x256xf32>
    %263 = vector.extract_strided_slice %262 {offsets = [0, 0], sizes = [8, 192], strides = [1, 1]} : vector<8x256xf32> to vector<8x192xf32>
    %264 = arith.negf %263 : vector<8x192xf32>
    %265 = math.exp %264 : vector<8x192xf32>
    %cst_75 = arith.constant 1.000000e+00 : f32
    %266 = vector.broadcast %cst_75 : f32 to vector<8x192xf32>
    %267 = arith.addf %266, %265 : vector<8x192xf32>
    %268 = arith.divf %266, %267 : vector<8x192xf32>
    %269 = vector.extract_strided_slice %262 {offsets = [0, 192], sizes = [8, 64], strides = [1, 1]} : vector<8x256xf32> to vector<8x64xf32>
    %270 = math.tanh %269 : vector<8x64xf32>
    %271 = vector.extract_strided_slice %268 {offsets = [0, 0], sizes = [8, 64], strides = [1, 1]} : vector<8x192xf32> to vector<8x64xf32>
    %272 = vector.extract_strided_slice %268 {offsets = [0, 64], sizes = [8, 64], strides = [1, 1]} : vector<8x192xf32> to vector<8x64xf32>
    %273 = vector.extract_strided_slice %268 {offsets = [0, 128], sizes = [8, 64], strides = [1, 1]} : vector<8x192xf32> to vector<8x64xf32>
    %274 = arith.mulf %272, %234 : vector<8x64xf32>
    %275 = arith.mulf %271, %270 : vector<8x64xf32>
    %276 = arith.addf %274, %275 : vector<8x64xf32>
    %277 = math.tanh %276 : vector<8x64xf32>
    %278 = arith.mulf %273, %277 : vector<8x64xf32>
    %c0_76 = arith.constant 0 : index
    %c0_77 = arith.constant 0 : index
    %279 = vector.load %arg9[%c0_76, %c0_77] : memref<8x128xf32, #tpu.memory_space<vmem>>, vector<8x64xf32>
    tpu.vector_store %arg9[%c0_76, %c0_77], %278 {strides = array<i32>} : memref<8x128xf32, #tpu.memory_space<vmem>>, vector<8x64xf32>,
    %c0_78 = arith.constant 0 : index
    %c0_79 = arith.constant 0 : index
    %280 = vector.load %arg9[%c0_78, %c0_79] : memref<8x128xf32, #tpu.memory_space<vmem>>, vector<8x128xf32>
    %cst_80 = arith.constant dense<0.000000e+00> : vector<8x512xf32>
    %281 = tpu.matmul %280, %0, %cst_80 {dimension_numbers = #tpu.dot_dimension_numbers<[1], [0], [0], [1], [0, 0, 1, 1], [], []>} : vector<8x128xf32>, vector<128x512xf32>, vector<8x512xf32> -> vector<8x512xf32>
    %282 = vector.extract_strided_slice %281 {offsets = [0, 0], sizes = [8, 256], strides = [1, 1]} : vector<8x512xf32> to vector<8x256xf32>
    %283 = vector.extract_strided_slice %281 {offsets = [0, 256], sizes = [8, 256], strides = [1, 1]} : vector<8x512xf32> to vector<8x256xf32>
    %284 = arith.addf %283, %3 : vector<8x256xf32>
    %285 = vector.extract_strided_slice %284 {offsets = [0, 0], sizes = [8, 192], strides = [1, 1]} : vector<8x256xf32> to vector<8x192xf32>
    %286 = arith.negf %285 : vector<8x192xf32>
    %287 = math.exp %286 : vector<8x192xf32>
    %cst_81 = arith.constant 1.000000e+00 : f32
    %288 = vector.broadcast %cst_81 : f32 to vector<8x192xf32>
    %289 = arith.addf %288, %287 : vector<8x192xf32>
    %290 = arith.divf %288, %289 : vector<8x192xf32>
    %291 = vector.extract_strided_slice %284 {offsets = [0, 192], sizes = [8, 64], strides = [1, 1]} : vector<8x256xf32> to vector<8x64xf32>
    %292 = math.tanh %291 : vector<8x64xf32>
    %293 = vector.extract_strided_slice %290 {offsets = [0, 0], sizes = [8, 64], strides = [1, 1]} : vector<8x192xf32> to vector<8x64xf32>
    %294 = vector.extract_strided_slice %290 {offsets = [0, 64], sizes = [8, 64], strides = [1, 1]} : vector<8x192xf32> to vector<8x64xf32>
    %295 = vector.extract_strided_slice %290 {offsets = [0, 128], sizes = [8, 64], strides = [1, 1]} : vector<8x192xf32> to vector<8x64xf32>
    %296 = arith.mulf %294, %256 : vector<8x64xf32>
    %297 = arith.mulf %293, %292 : vector<8x64xf32>
    %298 = arith.addf %296, %297 : vector<8x64xf32>
    %299 = math.tanh %298 : vector<8x64xf32>
    %300 = arith.mulf %295, %299 : vector<8x64xf32>
    %c0_82 = arith.constant 0 : index
    %c64_83 = arith.constant 64 : index
    %301 = vector.load %arg9[%c0_82, %c64_83] : memref<8x128xf32, #tpu.memory_space<vmem>>, vector<8x64xf32>
    tpu.vector_store %arg9[%c0_82, %c64_83], %300 {strides = array<i32>} : memref<8x128xf32, #tpu.memory_space<vmem>>, vector<8x64xf32>,
    %c7 = arith.constant 7 : index
    %c0_84 = arith.constant 0 : index
    %c0_85 = arith.constant 0 : index
    %302 = vector.load %arg1[%c7, %c0_84, %c0_85] : memref<8x8x256xf32, #tpu.memory_space<vmem>>, vector<1x8x256xf32>
    %303 = vector.shape_cast %302 : vector<1x8x256xf32> to vector<8x256xf32>
    %304 = arith.addf %303, %282 : vector<8x256xf32>
    %305 = vector.extract_strided_slice %304 {offsets = [0, 0], sizes = [8, 192], strides = [1, 1]} : vector<8x256xf32> to vector<8x192xf32>
    %306 = arith.negf %305 : vector<8x192xf32>
    %307 = math.exp %306 : vector<8x192xf32>
    %cst_86 = arith.constant 1.000000e+00 : f32
    %308 = vector.broadcast %cst_86 : f32 to vector<8x192xf32>
    %309 = arith.addf %308, %307 : vector<8x192xf32>
    %310 = arith.divf %308, %309 : vector<8x192xf32>
    %311 = vector.extract_strided_slice %304 {offsets = [0, 192], sizes = [8, 64], strides = [1, 1]} : vector<8x256xf32> to vector<8x64xf32>
    %312 = math.tanh %311 : vector<8x64xf32>
    %313 = vector.extract_strided_slice %310 {offsets = [0, 0], sizes = [8, 64], strides = [1, 1]} : vector<8x192xf32> to vector<8x64xf32>
    %314 = vector.extract_strided_slice %310 {offsets = [0, 64], sizes = [8, 64], strides = [1, 1]} : vector<8x192xf32> to vector<8x64xf32>
    %315 = vector.extract_strided_slice %310 {offsets = [0, 128], sizes = [8, 64], strides = [1, 1]} : vector<8x192xf32> to vector<8x64xf32>
    %316 = arith.mulf %314, %276 : vector<8x64xf32>
    %317 = arith.mulf %313, %312 : vector<8x64xf32>
    %318 = arith.addf %316, %317 : vector<8x64xf32>
    %319 = math.tanh %318 : vector<8x64xf32>
    %320 = arith.mulf %315, %319 : vector<8x64xf32>
    %c0_87 = arith.constant 0 : index
    %c0_88 = arith.constant 0 : index
    %321 = vector.load %arg9[%c0_87, %c0_88] : memref<8x128xf32, #tpu.memory_space<vmem>>, vector<8x64xf32>
    tpu.vector_store %arg9[%c0_87, %c0_88], %320 {strides = array<i32>} : memref<8x128xf32, #tpu.memory_space<vmem>>, vector<8x64xf32>,
    %c0_89 = arith.constant 0 : index
    %c0_90 = arith.constant 0 : index
    %322 = vector.load %arg9[%c0_89, %c0_90] : memref<8x128xf32, #tpu.memory_space<vmem>>, vector<8x128xf32>
    %cst_91 = arith.constant dense<0.000000e+00> : vector<8x512xf32>
    %323 = tpu.matmul %322, %0, %cst_91 {dimension_numbers = #tpu.dot_dimension_numbers<[1], [0], [0], [1], [0, 0, 1, 1], [], []>} : vector<8x128xf32>, vector<128x512xf32>, vector<8x512xf32> -> vector<8x512xf32>
    %324 = vector.extract_strided_slice %323 {offsets = [0, 256], sizes = [8, 256], strides = [1, 1]} : vector<8x512xf32> to vector<8x256xf32>
    %325 = arith.addf %324, %3 : vector<8x256xf32>
    %326 = vector.extract_strided_slice %325 {offsets = [0, 0], sizes = [8, 192], strides = [1, 1]} : vector<8x256xf32> to vector<8x192xf32>
    %327 = arith.negf %326 : vector<8x192xf32>
    %328 = math.exp %327 : vector<8x192xf32>
    %cst_92 = arith.constant 1.000000e+00 : f32
    %329 = vector.broadcast %cst_92 : f32 to vector<8x192xf32>
    %330 = arith.addf %329, %328 : vector<8x192xf32>
    %331 = arith.divf %329, %330 : vector<8x192xf32>
    %332 = vector.extract_strided_slice %325 {offsets = [0, 192], sizes = [8, 64], strides = [1, 1]} : vector<8x256xf32> to vector<8x64xf32>
    %333 = math.tanh %332 : vector<8x64xf32>
    %334 = vector.extract_strided_slice %331 {offsets = [0, 0], sizes = [8, 64], strides = [1, 1]} : vector<8x192xf32> to vector<8x64xf32>
    %335 = vector.extract_strided_slice %331 {offsets = [0, 64], sizes = [8, 64], strides = [1, 1]} : vector<8x192xf32> to vector<8x64xf32>
    %336 = vector.extract_strided_slice %331 {offsets = [0, 128], sizes = [8, 64], strides = [1, 1]} : vector<8x192xf32> to vector<8x64xf32>
    %337 = arith.mulf %335, %298 : vector<8x64xf32>
    %338 = arith.mulf %334, %333 : vector<8x64xf32>
    %339 = arith.addf %337, %338 : vector<8x64xf32>
    %340 = math.tanh %339 : vector<8x64xf32>
    %341 = arith.mulf %336, %340 : vector<8x64xf32>
    %c0_93 = arith.constant 0 : index
    %c64_94 = arith.constant 64 : index
    %342 = vector.load %arg9[%c0_93, %c64_94] : memref<8x128xf32, #tpu.memory_space<vmem>>, vector<8x64xf32>
    tpu.vector_store %arg9[%c0_93, %c64_94], %341 {strides = array<i32>} : memref<8x128xf32, #tpu.memory_space<vmem>>, vector<8x64xf32>,
    %c0_95 = arith.constant 0 : index
    %c0_96 = arith.constant 0 : index
    %343 = vector.load %arg4[%c0_95, %c0_96] : memref<64x32xf32, #tpu.memory_space<vmem>>, vector<64x32xf32>
    %cst_97 = arith.constant dense<0.000000e+00> : vector<8x32xf32>
    %344 = tpu.matmul %341, %343, %cst_97 {dimension_numbers = #tpu.dot_dimension_numbers<[1], [0], [0], [1], [0, 0, 1, 1], [], []>} : vector<8x64xf32>, vector<64x32xf32>, vector<8x32xf32> -> vector<8x32xf32>
    %c0_98 = arith.constant 0 : index
    %c0_99 = arith.constant 0 : index
    %345 = vector.load %arg5[%c0_98, %c0_99] : memref<1x32xf32, #tpu.memory_space<vmem>>, vector<1x32xf32>
    %346 = vector.broadcast %345 : vector<1x32xf32> to vector<8x32xf32>
    %347 = arith.addf %344, %346 : vector<8x32xf32>
    %cst_100 = arith.constant 0.000000e+00 : f32
    %348 = vector.broadcast %cst_100 : f32 to vector<8x32xf32>
    %349 = arith.maximumf %347, %348 : vector<8x32xf32>
    %c0_101 = arith.constant 0 : index
    %c0_102 = arith.constant 0 : index
    %350 = vector.load %arg6[%c0_101, %c0_102] : memref<1x32xf32, #tpu.memory_space<vmem>>, vector<1x32xf32>
    %351 = vector.broadcast %350 : vector<1x32xf32> to vector<8x32xf32>
    %352 = arith.mulf %349, %351 : vector<8x32xf32>
    %cst_103 = arith.constant dense<0.000000e+00> : vector<8xf32>
    %353 = vector.multi_reduction <add>, %352, %cst_103 [1] : vector<8x32xf32> to vector<8xf32>
    %354 = vector.shape_cast %353 : vector<8xf32> to vector<8x1xf32>
    %c0_104 = arith.constant 0 : index
    %c0_105 = arith.constant 0 : index
    %355 = vector.load %arg7[%c0_104, %c0_105] : memref<1x1xf32, #tpu.memory_space<vmem>>, vector<1x1xf32>
    %356 = vector.broadcast %355 : vector<1x1xf32> to vector<8x1xf32>
    %357 = arith.addf %354, %356 : vector<8x1xf32>
    %c0_106 = arith.constant 0 : index
    %c0_107 = arith.constant 0 : index
    %358 = vector.load %arg8[%c0_106, %c0_107] : memref<8x1xf32, #tpu.memory_space<vmem>>, vector<8x1xf32>
    tpu.vector_store %arg8[%c0_106, %c0_107], %357 {strides = array<i32>} : memref<8x1xf32, #tpu.memory_space<vmem>>, vector<8x1xf32>,
    return
  }
  func.func @transform_0(%arg0: i32) -> (i32, i32, i32) {
    %c0_i32 = arith.constant 0 : i32
    %c0_i32_0 = arith.constant 0 : i32
    %c0_i32_1 = arith.constant 0 : i32
    return %c0_i32, %arg0, %c0_i32_0 : i32, i32, i32
  }
  func.func @transform_1(%arg0: i32) -> (i32, i32) {
    %c0_i32 = arith.constant 0 : i32
    %c0_i32_0 = arith.constant 0 : i32
    %c0_i32_1 = arith.constant 0 : i32
    return %c0_i32, %c0_i32_0 : i32, i32
  }
  func.func @transform_2(%arg0: i32) -> (i32, i32) {
    %c0_i32 = arith.constant 0 : i32
    %c0_i32_0 = arith.constant 0 : i32
    %c0_i32_1 = arith.constant 0 : i32
    return %c0_i32, %c0_i32_0 : i32, i32
  }
  func.func @transform_3(%arg0: i32) -> (i32, i32) {
    %c0_i32 = arith.constant 0 : i32
    %c0_i32_0 = arith.constant 0 : i32
    %c0_i32_1 = arith.constant 0 : i32
    return %c0_i32, %c0_i32_0 : i32, i32
  }
  func.func @transform_4(%arg0: i32) -> (i32, i32) {
    %c0_i32 = arith.constant 0 : i32
    %c0_i32_0 = arith.constant 0 : i32
    %c0_i32_1 = arith.constant 0 : i32
    return %c0_i32, %c0_i32_0 : i32, i32
  }
  func.func @transform_5(%arg0: i32) -> (i32, i32) {
    %c0_i32 = arith.constant 0 : i32
    %c0_i32_0 = arith.constant 0 : i32
    %c0_i32_1 = arith.constant 0 : i32
    return %c0_i32, %c0_i32_0 : i32, i32
  }
  func.func @transform_6(%arg0: i32) -> (i32, i32) {
    %c0_i32 = arith.constant 0 : i32
    %c0_i32_0 = arith.constant 0 : i32
    %c0_i32_1 = arith.constant 0 : i32
    return %c0_i32, %c0_i32_0 : i32, i32
  }
  func.func @transform_7(%arg0: i32) -> (i32, i32) {
    %c0_i32 = arith.constant 0 : i32
    %c0_i32_0 = arith.constant 0 : i32
    return %arg0, %c0_i32 : i32, i32
  }
}

</mosaic_0001>

<llo_original>
// kernel: tpu_custom_call.1
$region0: #{tpu_custom_call.1}
  #allocation0 [shape = 'u32[]', space=smem, size = 0x4, offset = 0x4, fixed_abs, tag = 'smem constant byte address 0x4 - core index']
  #allocation1 [shape = 'u32[144,128]{1,0:T(1,128)}', space=vmem, size = 0x12000, scoped, tag = 'internal scratch']
  #allocation2 [shape = 'f32[8,128]{1,0:T(8,128)}', space=vmem, size = 0x1000, scoped, tag = 'scratch operand']
  #allocation3 [shape = 'f32[1,1]{1,0:T(1,128)S(1)}', space=vmem, size = 0x200, scoped, tag = 'scoped memory for tpu_custom_call.1']
  %s0 = inlined_call_operand.hbm [shape: f32[8,8,256], index: 0, kind: input, shape index: {}]
  %s1 = inlined_call_operand.hbm [shape: f32[128,512], index: 1, kind: input, shape index: {}]
  %s2 = inlined_call_operand.vmem [shape: f32[1,256], index: 2, kind: input, shape index: {}]
  %s3 = inlined_call_operand.vmem [shape: f32[64,32], index: 3, kind: input, shape index: {}]
  %s4 = inlined_call_operand.vmem [shape: f32[1,32], index: 4, kind: input, shape index: {}]
  %s5 = inlined_call_operand.vmem [shape: f32[1,32], index: 5, kind: input, shape index: {}]
  %s6 = inlined_call_operand.<no memory space> [shape: f32[1,1], index: 6, kind: input, shape index: {}]
  %s7 = inlined_call_operand.vmem [shape: f32[8,1], index: 7, kind: output, shape index: {}]
  %s8 = sld [smem:[#allocation0]]
  $region46: #{tpu_custom_call.1} parent=0
    _
  %s10 = ssub.s32 1, %s8
  %s11 = scalar_select 0, %s10, %s8
  %v12 = vstv %s6
  %13 = vst [vmem:[#allocation3] sm:$0x1] %v12
  $region1: #{tpu_custom_call.1} parent=0
    #allocation4 [shape = 'u8[65536]{0}', space=vmem, size = 0x10000, scoped, tag = 'input window, operand 0, single buffered']
    #allocation5 [shape = 's32[1]{0}', space=sflag, size = 0x4, scoped, tag = 'scoped memory for tpu_custom_call.1']
    #allocation6 [shape = 'u8[262144]{0}', space=vmem, size = 0x40000, scoped, tag = 'input window, operand 1, single buffered']
    #allocation7 [shape = 's32[1]{0}', space=sflag, size = 0x4, scoped, tag = 'scoped memory for tpu_custom_call.1']
    %14 = vsyncpa [#allocation5], 0
    %15 = vsyncpa [#allocation7], 0
    // Predicated region
    $region2: #{tpu_custom_call.1} parent=1 // pred_check
      _
    $region3: #{tpu_custom_call.1} parent=1 // pred_check_branch
      %17 = sbr.rel (0) target = $region5
    $region4: #{tpu_custom_call.1} parent=1 // pred_region
      %s19 = ssub.s32 2048, 2048
      %20 = vsyncadd [#allocation5], %s19
      %s21 = sshll.u32 [#allocation4], 4
      %s22 = int_to_ptr.vmem [resolvable:$true] %s21
      %27 = dma.hbm_to_vmem [thread:$0]  %s0, 2048, %s22, [#allocation5], 256, 256, 16
    $region5: #{tpu_custom_call.1} parent=1 // pred_fallthru
      _
    // Predicated region
    $region6: #{tpu_custom_call.1} parent=1 // pred_check
      _
    $region7: #{tpu_custom_call.1} parent=1 // pred_check_branch
      %29 = sbr.rel (0) target = $region9
    $region8: #{tpu_custom_call.1} parent=1 // pred_region
      %s31 = ssub.s32 8192, 8192
      %32 = vsyncadd [#allocation7], %s31
      %s33 = sshll.u32 [#allocation6], 4
      %s34 = int_to_ptr.vmem [resolvable:$true] %s33
      %39 = dma.hbm_to_vmem [thread:$0]  %s1, 8192, %s34, [#allocation7], 512, 512, 32
    $region9: #{tpu_custom_call.1} parent=1 // pred_fallthru
      _
    // Predicated region
    $region10: #{tpu_custom_call.1} parent=1 // pred_check
      _
    $region11: #{tpu_custom_call.1} parent=1 // pred_check_branch
      %41 = sbr.rel (0) target = $region13
    $region12: #{tpu_custom_call.1} parent=1 // pred_region
      _
    $region13: #{tpu_custom_call.1} parent=1 // pred_fallthru
      _
    // Predicated region
    $region14: #{tpu_custom_call.1} parent=1 // pred_check
      _
    $region15: #{tpu_custom_call.1} parent=1 // pred_check_branch
      %43 = sbr.rel (0) target = $region17
    $region16: #{tpu_custom_call.1} parent=1 // pred_region
      _
    $region17: #{tpu_custom_call.1} parent=1 // pred_fallthru
      _
    // Predicated region
    $region18: #{tpu_custom_call.1} parent=1 // pred_check
      _
    $region19: #{tpu_custom_call.1} parent=1 // pred_check_branch
      %45 = sbr.rel (0) target = $region21
    $region20: #{tpu_custom_call.1} parent=1 // pred_region
      _
    $region21: #{tpu_custom_call.1} parent=1 // pred_fallthru
      _
    // Predicated region
    $region22: #{tpu_custom_call.1} parent=1 // pred_check
      _
    $region23: #{tpu_custom_call.1} parent=1 // pred_check_branch
      %47 = sbr.rel (0) target = $region25
    $region24: #{tpu_custom_call.1} parent=1 // pred_region
      _
    $region25: #{tpu_custom_call.1} parent=1 // pred_fallthru
      _
    // Predicated region
    $region26: #{tpu_custom_call.1} parent=1 // pred_check
      _
    $region27: #{tpu_custom_call.1} parent=1 // pred_check_branch
      %49 = sbr.rel (0) target = $region29
    $region28: #{tpu_custom_call.1} parent=1 // pred_region
      _
    $region29: #{tpu_custom_call.1} parent=1 // pred_fallthru
      _
    // Predicated region
    $region30: #{tpu_custom_call.1} parent=1 // pred_check
      _
    $region31: #{tpu_custom_call.1} parent=1 // pred_check_branch
      %51 = sbr.rel (0) target = $region33
    $region32: #{tpu_custom_call.1} parent=1 // pred_region
      %52 = dma.done [#allocation5], 2048
    $region33: #{tpu_custom_call.1} parent=1 // pred_fallthru
      _
    // Predicated region
    $region34: #{tpu_custom_call.1} parent=1 // pred_check
      _
    $region35: #{tpu_custom_call.1} parent=1 // pred_check_branch
      %54 = sbr.rel (0) target = $region37
    $region36: #{tpu_custom_call.1} parent=1 // pred_region
      %55 = dma.done [#allocation7], 8192
    $region37: #{tpu_custom_call.1} parent=1 // pred_fallthru
      _
    %v56 = vld [vmem:[#allocation6] sm:$0xff]
    %v57 = vld [vmem:[#allocation6 + $0x8] sm:$0xff]
    %v58 = vld [vmem:[#allocation6 + $0x10] sm:$0xff]
    %v59 = vld [vmem:[#allocation6 + $0x18] sm:$0xff]
    %v60 = vld [vmem:[#allocation6 + $0x20] sm:$0xff]
    %v61 = vld [vmem:[#allocation6 + $0x28] sm:$0xff]
    %v62 = vld [vmem:[#allocation6 + $0x30] sm:$0xff]
    %v63 = vld [vmem:[#allocation6 + $0x38] sm:$0xff]
    %v64 = vld [vmem:[#allocation6 + $0x40] sm:$0xff]
    %v65 = vld [vmem:[#allocation6 + $0x48] sm:$0xff]
    %v66 = vld [vmem:[#allocation6 + $0x50] sm:$0xff]
    %v67 = vld [vmem:[#allocation6 + $0x58] sm:$0xff]
    %v68 = vld [vmem:[#allocation6 + $0x60] sm:$0xff]
    %v69 = vld [vmem:[#allocation6 + $0x68] sm:$0xff]
    %v70 = vld [vmem:[#allocation6 + $0x70] sm:$0xff]
    %v71 = vld [vmem:[#allocation6 + $0x78] sm:$0xff]
    %v72 = vld [vmem:[#allocation6 + $0x80] sm:$0xff]
    %v73 = vld [vmem:[#allocation6 + $0x88] sm:$0xff]
    %v74 = vld [vmem:[#allocation6 + $0x90] sm:$0xff]
    %v75 = vld [vmem:[#allocation6 + $0x98] sm:$0xff]
    %v76 = vld [vmem:[#allocation6 + $0xa0] sm:$0xff]
    %v77 = vld [vmem:[#allocation6 + $0xa8] sm:$0xff]
    %v78 = vld [vmem:[#allocation6 + $0xb0] sm:$0xff]
    %v79 = vld [vmem:[#allocation6 + $0xb8] sm:$0xff]
    %v80 = vld [vmem:[#allocation6 + $0xc0] sm:$0xff]
    %v81 = vld [vmem:[#allocation6 + $0xc8] sm:$0xff]
    %v82 = vld [vmem:[#allocation6 + $0xd0] sm:$0xff]
    %v83 = vld [vmem:[#allocation6 + $0xd8] sm:$0xff]
    %v84 = vld [vmem:[#allocation6 + $0xe0] sm:$0xff]
    %v85 = vld [vmem:[#allocation6 + $0xe8] sm:$0xff]
    %v86 = vld [vmem:[#allocation6 + $0xf0] sm:$0xff]
    %v87 = vld [vmem:[#allocation6 + $0xf8] sm:$0xff]
    %v88 = vld [vmem:[#allocation6 + $0x100] sm:$0xff]
    %v89 = vld [vmem:[#allocation6 + $0x108] sm:$0xff]
    %v90 = vld [vmem:[#allocation6 + $0x110] sm:$0xff]
    %v91 = vld [vmem:[#allocation6 + $0x118] sm:$0xff]
    %v92 = vld [vmem:[#allocation6 + $0x120] sm:$0xff]
    %v93 = vld [vmem:[#allocation6 + $0x128] sm:$0xff]
    %v94 = vld [vmem:[#allocation6 + $0x130] sm:$0xff]
    %v95 = vld [vmem:[#allocation6 + $0x138] sm:$0xff]
    %v96 = vld [vmem:[#allocation6 + $0x140] sm:$0xff]
    %v97 = vld [vmem:[#allocation6 + $0x148] sm:$0xff]
    %v98 = vld [vmem:[#allocation6 + $0x150] sm:$0xff]
    %v99 = vld [vmem:[#allocation6 + $0x158] sm:$0xff]
    %v100 = vld [vmem:[#allocation6 + $0x160] sm:$0xff]
    %v101 = vld [vmem:[#allocation6 + $0x168] sm:$0xff]
    %v102 = vld [vmem:[#allocation6 + $0x170] sm:$0xff]
    %v103 = vld [vmem:[#allocation6 + $0x178] sm:$0xff]
    %v104 = vld [vmem:[#allocation6 + $0x180] sm:$0xff]
    %v105 = vld [vmem:[#allocation6 + $0x188] sm:$0xff]
    %v106 = vld [vmem:[#allocation6 + $0x190] sm:$0xff]
    %v107 = vld [vmem:[#allocation6 + $0x198] sm:$0xff]
    %v108 = vld [vmem:[#allocation6 + $0x1a0] sm:$0xff]
    %v109 = vld [vmem:[#allocation6 + $0x1a8] sm:$0xff]
    %v110 = vld [vmem:[#allocation6 + $0x1b0] sm:$0xff]
    %v111 = vld [vmem:[#allocation6 + $0x1b8] sm:$0xff]
    %v112 = vld [vmem:[#allocation6 + $0x1c0] sm:$0xff]
    %v113 = vld [vmem:[#allocation6 + $0x1c8] sm:$0xff]
    %v114 = vld [vmem:[#allocation6 + $0x1d0] sm:$0xff]
    %v115 = vld [vmem:[#allocation6 + $0x1d8] sm:$0xff]
    %v116 = vld [vmem:[#allocation6 + $0x1e0] sm:$0xff]
    %v117 = vld [vmem:[#allocation6 + $0x1e8] sm:$0xff]
    %v118 = vld [vmem:[#allocation6 + $0x1f0] sm:$0xff]
    %v119 = vld [vmem:[#allocation6 + $0x1f8] sm:$0xff]
    %v120 = vld [vmem:[%s2] sm:$0x3]
    %v122 = vlaneseq
    %v123 = vshrl.u32 %v122, 7
    %v124 = vsub.s32 0, %v123
    %v125 = vrot.slane %v120, %v124
    %v126 = vlaneseq
    %v127 = vshrl.u32 %v126, 7
    %v128 = vsub.s32 1, %v127
    %v129 = vrot.slane %v120, %v128
    %132 = vst [vmem:[#allocation2] sm:$0xff] 0.0
    %v133 = vld [vmem:[#allocation4] sm:$0xff]
    %v134 = vld [vmem:[#allocation4 + $0x8] sm:$0xff]
    %v135 = vadd.f32 %v133, 0.0
    %v136 = vadd.f32 %v134, 0.0
    %v137 = vxor.u32 %v135, 2147483648
    %v138 = vxor.u32 %v136, 2147483648
    %v139 = vmul.f32 %v137, 1.442695
    %v140 = vpow.pop %v139
    %v141 = vmul.f32 %v138, 1.442695
    %v142 = vpow.pop %v141
    %v143 = vadd.f32 %v140, 1.0
    %v144 = vadd.f32 %v142, 1.0
    %v145 = vrcp.pop %v143
    %v146 = vmul.f32 1.0, %v145
    %v147 = vrcp.pop %v144
    %v148 = vmul.f32 1.0, %v147
    %v149 = vtanh.pop %v136
    %v150 = vmul.f32 %v146, 0.0
    %152 = vrot.lane.b32.xlu0 %v149, 64
    %v153 = vpop.permute.xlu0 %152
    %v155 = vmul.f32 %v146, %v153
    %157 = vrot.lane.b32.xlu0 %v155, 64
    %v158 = vpop.permute.xlu0 %157
    %v160 = vadd.f32 %v150, %v158
    %v161 = vtanh.pop %v160
    %163 = vrot.lane.b32.xlu0 %v161, 64
    %v164 = vpop.permute.xlu0 %163
    %v166 = vmul.f32 %v148, %v164
    %vm167 = vcmask 523264
    %168 = vst.msk [vmem:[#allocation2] sm:$0xff] %vm167, %v166
    %v169 = vld [vmem:[#allocation2] sm:$0xff]
    %170 = vmatprep.subr.mxu0 %v57
    %171 = vmatpush1.msra.mxu0 %v56
    %172 = vmatprep.subr.mxu0 %v61
    %173 = vmatpush1.msra.mxu0 %v60
    %174 = vmatprep.subr.mxu0 %v65
    %175 = vmatpush1.msra.mxu0 %v64
    %176 = vmatprep.subr.mxu0 %v69
    %177 = vmatpush1.msra.mxu0 %v68
    %178 = vmatprep.subr.mxu0 %v73
    %179 = vmatpush1.msra.mxu0 %v72
    %180 = vmatprep.subr.mxu0 %v77
    %181 = vmatpush1.msra.mxu0 %v76
    %182 = vmatprep.subr.mxu0 %v81
    %183 = vmatpush1.msra.mxu0 %v80
    %184 = vmatprep.subr.mxu0 %v85
    %185 = vmatpush1.msra.mxu0 %v84
    %186 = vmatprep.subr.mxu0 %v89
    %187 = vmatpush1.msra.mxu0 %v88
    %188 = vmatprep.subr.mxu0 %v93
    %189 = vmatpush1.msra.mxu0 %v92
    %190 = vmatprep.subr.mxu0 %v97
    %191 = vmatpush1.msra.mxu0 %v96
    %192 = vmatprep.subr.mxu0 %v101
    %193 = vmatpush1.msra.mxu0 %v100
    %194 = vmatprep.subr.mxu0 %v105
    %195 = vmatpush1.msra.mxu0 %v104
    %196 = vmatprep.subr.mxu0 %v109
    %197 = vmatpush1.msra.mxu0 %v108
    %198 = vmatprep.subr.mxu0 %v113
    %199 = vmatpush1.msra.mxu0 %v112
    %200 = vmatprep.subr.mxu0 %v117
    %201 = vmatpush1.msra.mxu0 %v116
    %202 = vmatprep.subr.mxu0 0.0
    %203 = vmatpush1.msra.mxu0 0.0
    %204 = vmatprep.subr.mxu0 0.0
    %205 = vmatpush1.msra.mxu0 0.0
    %206 = vmatprep.subr.mxu0 0.0
    %207 = vmatpush1.msra.mxu0 0.0
    %208 = vmatprep.subr.mxu0 0.0
    %209 = vmatpush1.msra.mxu0 0.0
    %210 = vmatprep.subr.mxu0 0.0
    %211 = vmatpush1.msra.mxu0 0.0
    %212 = vmatprep.subr.mxu0 0.0
    %213 = vmatpush1.msra.mxu0 0.0
    %214 = vmatprep.subr.mxu0 0.0
    %215 = vmatpush1.msra.mxu0 0.0
    %216 = vmatprep.subr.mxu0 0.0
    %217 = vmatpush1.msra.mxu0 0.0
    %218 = vmatprep.subr.mxu0 0.0
    %219 = vmatpush1.msra.mxu0 0.0
    %220 = vmatprep.subr.mxu0 0.0
    %221 = vmatpush1.msra.mxu0 0.0
    %222 = vmatprep.subr.mxu0 0.0
    %223 = vmatpush1.msra.mxu0 0.0
    %224 = vmatprep.subr.mxu0 0.0
    %225 = vmatpush1.msra.mxu0 0.0
    %226 = vmatprep.subr.mxu0 0.0
    %227 = vmatpush1.msra.mxu0 0.0
    %228 = vmatprep.subr.mxu0 0.0
    %229 = vmatpush1.msra.mxu0 0.0
    %230 = vmatprep.subr.mxu0 0.0
    %231 = vmatpush1.msra.mxu0 0.0
    %232 = vmatprep.subr.mxu0 0.0
    %233 = vmatpush1.msra.mxu0 0.0
    %234 = vmatprep.mubr.f32.mxu0 0.0
    %235 = vmatmul.mubr.f32.gmra.mrb[0].mxu0 %v169
    %v236 = vpop.f32.mrb[0].mxu0
    %v237 = vadd.f32 0.0, %v236
    %v238 = vpop.f32.mrb[0].mxu0
    %v239 = vadd.f32 0.0, %v238
    %240 = vdwg.mxu0
    %241 = vmatprep.subr.mxu0 %v59
    %242 = vmatpush1.msra.mxu0 %v58
    %243 = vmatprep.subr.mxu0 %v63
    %244 = vmatpush1.msra.mxu0 %v62
    %245 = vmatprep.subr.mxu0 %v67
    %246 = vmatpush1.msra.mxu0 %v66
    %247 = vmatprep.subr.mxu0 %v71
    %248 = vmatpush1.msra.mxu0 %v70
    %249 = vmatprep.subr.mxu0 %v75
    %250 = vmatpush1.msra.mxu0 %v74
    %251 = vmatprep.subr.mxu0 %v79
    %252 = vmatpush1.msra.mxu0 %v78
    %253 = vmatprep.subr.mxu0 %v83
    %254 = vmatpush1.msra.mxu0 %v82
    %255 = vmatprep.subr.mxu0 %v87
    %256 = vmatpush1.msra.mxu0 %v86
    %257 = vmatprep.subr.mxu0 %v91
    %258 = vmatpush1.msra.mxu0 %v90
    %259 = vmatprep.subr.mxu0 %v95
    %260 = vmatpush1.msra.mxu0 %v94
    %261 = vmatprep.subr.mxu0 %v99
    %262 = vmatpush1.msra.mxu0 %v98
    %263 = vmatprep.subr.mxu0 %v103
    %264 = vmatpush1.msra.mxu0 %v102
    %265 = vmatprep.subr.mxu0 %v107
    %266 = vmatpush1.msra.mxu0 %v106
    %267 = vmatprep.subr.mxu0 %v111
    %268 = vmatpush1.msra.mxu0 %v110
    %269 = vmatprep.subr.mxu0 %v115
    %270 = vmatpush1.msra.mxu0 %v114
    %271 = vmatprep.subr.mxu0 %v119
    %272 = vmatpush1.msra.mxu0 %v118
    %273 = vmatprep.subr.mxu0 0.0
    %274 = vmatpush1.msra.mxu0 0.0
    %275 = vmatprep.subr.mxu0 0.0
    %276 = vmatpush1.msra.mxu0 0.0
    %277 = vmatprep.subr.mxu0 0.0
    %278 = vmatpush1.msra.mxu0 0.0
    %279 = vmatprep.subr.mxu0 0.0
    %280 = vmatpush1.msra.mxu0 0.0
    %281 = vmatprep.subr.mxu0 0.0
    %282 = vmatpush1.msra.mxu0 0.0
    %283 = vmatprep.subr.mxu0 0.0
    %284 = vmatpush1.msra.mxu0 0.0
    %285 = vmatprep.subr.mxu0 0.0
    %286 = vmatpush1.msra.mxu0 0.0
    %287 = vmatprep.subr.mxu0 0.0
    %288 = vmatpush1.msra.mxu0 0.0
    %289 = vmatprep.subr.mxu0 0.0
    %290 = vmatpush1.msra.mxu0 0.0
    %291 = vmatprep.subr.mxu0 0.0
    %292 = vmatpush1.msra.mxu0 0.0
    %293 = vmatprep.subr.mxu0 0.0
    %294 = vmatpush1.msra.mxu0 0.0
    %295 = vmatprep.subr.mxu0 0.0
    %296 = vmatpush1.msra.mxu0 0.0
    %297 = vmatprep.subr.mxu0 0.0
    %298 = vmatpush1.msra.mxu0 0.0
    %299 = vmatprep.subr.mxu0 0.0
    %300 = vmatpush1.msra.mxu0 0.0
    %301 = vmatprep.subr.mxu0 0.0
    %302 = vmatpush1.msra.mxu0 0.0
    %303 = vmatprep.subr.mxu0 0.0
    %304 = vmatpush1.msra.mxu0 0.0
    %305 = vmatprep.mubr.f32.mxu0 0.0
    %306 = vmatmul.mubr.f32.gmra.mrb[0].mxu0 %v169
    %v307 = vpop.f32.mrb[0].mxu0
    %v308 = vadd.f32 0.0, %v307
    %v309 = vpop.f32.mrb[0].mxu0
    %v310 = vadd.f32 0.0, %v309
    %311 = vdwg.mxu0
    %v312 = vadd.f32 %v308, %v125
    %v313 = vadd.f32 %v310, %v129
    %v314 = vxor.u32 %v312, 2147483648
    %v315 = vxor.u32 %v313, 2147483648
    %v316 = vmul.f32 %v314, 1.442695
    %v317 = vpow.pop %v316
    %v318 = vmul.f32 %v315, 1.442695
    %v319 = vpow.pop %v318
    %v320 = vadd.f32 %v317, 1.0
    %v321 = vadd.f32 %v319, 1.0
    %v322 = vrcp.pop %v320
    %v323 = vmul.f32 1.0, %v322
    %v324 = vrcp.pop %v321
    %v325 = vmul.f32 1.0, %v324
    %v326 = vtanh.pop %v313
    %v327 = vmul.f32 %v323, 0.0
    %329 = vrot.lane.b32.xlu0 %v326, 64
    %v330 = vpop.permute.xlu0 %329
    %v332 = vmul.f32 %v323, %v330
    %334 = vrot.lane.b32.xlu0 %v332, 64
    %v335 = vpop.permute.xlu0 %334
    %v337 = vadd.f32 %v327, %v335
    %v338 = vtanh.pop %v337
    %340 = vrot.lane.b32.xlu0 %v338, 64
    %v341 = vpop.permute.xlu0 %340
    %v343 = vmul.f32 %v325, %v341
    %345 = vrot.lane.b32.xlu0 %v343, 64
    %v346 = vpop.permute.xlu0 %345
    %vm348 = vcmask 1048064
    %349 = vst.msk [vmem:[#allocation2] sm:$0xff] %vm348, %v346
    %s350 = scalar_lea.vmem [#allocation4], 16
    %v351 = vld [vmem:[%s350] sm:$0xff]
    %v352 = vld [vmem:[%s350 + $0x8] sm:$0xff]
    %v353 = vadd.f32 %v351, %v237
    %v354 = vadd.f32 %v352, %v239
    %v355 = vxor.u32 %v353, 2147483648
    %v356 = vxor.u32 %v354, 2147483648
    %v357 = vmul.f32 %v355, 1.442695
    %v358 = vpow.pop %v357
    %v359 = vmul.f32 %v356, 1.442695
    %v360 = vpow.pop %v359
    %v361 = vadd.f32 %v358, 1.0
    %v362 = vadd.f32 %v360, 1.0
    %v363 = vrcp.pop %v361
    %v364 = vmul.f32 1.0, %v363
    %v365 = vrcp.pop %v362
    %v366 = vmul.f32 1.0, %v365
    %v367 = vtanh.pop %v354
    %v368 = vmul.f32 %v364, %v160
    %370 = vrot.lane.b32.xlu0 %v367, 64
    %v371 = vpop.permute.xlu0 %370
    %v373 = vmul.f32 %v364, %v371
    %375 = vrot.lane.b32.xlu0 %v373, 64
    %v376 = vpop.permute.xlu0 %375
    %v378 = vadd.f32 %v368, %v376
    %v379 = vtanh.pop %v378
    %381 = vrot.lane.b32.xlu0 %v379, 64
    %v382 = vpop.permute.xlu0 %381
    %v384 = vmul.f32 %v366, %v382
    %385 = vst.msk [vmem:[#allocation2] sm:$0xff] %vm167, %v384
    %v386 = vld [vmem:[#allocation2] sm:$0xff]
    %387 = vmatprep.subr.mxu0 %v57
    %388 = vmatpush1.msra.mxu0 %v56
    %389 = vmatprep.subr.mxu0 %v61
    %390 = vmatpush1.msra.mxu0 %v60
    %391 = vmatprep.subr.mxu0 %v65
    %392 = vmatpush1.msra.mxu0 %v64
    %393 = vmatprep.subr.mxu0 %v69
    %394 = vmatpush1.msra.mxu0 %v68
    %395 = vmatprep.subr.mxu0 %v73
    %396 = vmatpush1.msra.mxu0 %v72
    %397 = vmatprep.subr.mxu0 %v77
    %398 = vmatpush1.msra.mxu0 %v76
    %399 = vmatprep.subr.mxu0 %v81
    %400 = vmatpush1.msra.mxu0 %v80
    %401 = vmatprep.subr.mxu0 %v85
    %402 = vmatpush1.msra.mxu0 %v84
    %403 = vmatprep.subr.mxu0 %v89
    %404 = vmatpush1.msra.mxu0 %v88
    %405 = vmatprep.subr.mxu0 %v93
    %406 = vmatpush1.msra.mxu0 %v92
    %407 = vmatprep.subr.mxu0 %v97
    %408 = vmatpush1.msra.mxu0 %v96
    %409 = vmatprep.subr.mxu0 %v101
    %410 = vmatpush1.msra.mxu0 %v100
    %411 = vmatprep.subr.mxu0 %v105
    %412 = vmatpush1.msra.mxu0 %v104
    %413 = vmatprep.subr.mxu0 %v109
    %414 = vmatpush1.msra.mxu0 %v108
    %415 = vmatprep.subr.mxu0 %v113
    %416 = vmatpush1.msra.mxu0 %v112
    %417 = vmatprep.subr.mxu0 %v117
    %418 = vmatpush1.msra.mxu0 %v116
    %419 = vmatprep.subr.mxu0 0.0
    %420 = vmatpush1.msra.mxu0 0.0
    %421 = vmatprep.subr.mxu0 0.0
    %422 = vmatpush1.msra.mxu0 0.0
    %423 = vmatprep.subr.mxu0 0.0
    %424 = vmatpush1.msra.mxu0 0.0
    %425 = vmatprep.subr.mxu0 0.0
    %426 = vmatpush1.msra.mxu0 0.0
    %427 = vmatprep.subr.mxu0 0.0
    %428 = vmatpush1.msra.mxu0 0.0
    %429 = vmatprep.subr.mxu0 0.0
    %430 = vmatpush1.msra.mxu0 0.0
    %431 = vmatprep.subr.mxu0 0.0
    %432 = vmatpush1.msra.mxu0 0.0
    %433 = vmatprep.subr.mxu0 0.0
    %434 = vmatpush1.msra.mxu0 0.0
    %435 = vmatprep.subr.mxu0 0.0
    %436 = vmatpush1.msra.mxu0 0.0
    %437 = vmatprep.subr.mxu0 0.0
    %438 = vmatpush1.msra.mxu0 0.0
    %439 = vmatprep.subr.mxu0 0.0
    %440 = vmatpush1.msra.mxu0 0.0
    %441 = vmatprep.subr.mxu0 0.0
    %442 = vmatpush1.msra.mxu0 0.0
    %443 = vmatprep.subr.mxu0 0.0
    %444 = vmatpush1.msra.mxu0 0.0
    %445 = vmatprep.subr.mxu0 0.0
    %446 = vmatpush1.msra.mxu0 0.0
    %447 = vmatprep.subr.mxu0 0.0
    %448 = vmatpush1.msra.mxu0 0.0
    %449 = vmatprep.subr.mxu0 0.0
    %450 = vmatpush1.msra.mxu0 0.0
    %451 = vmatprep.mubr.f32.mxu0 0.0
    %452 = vmatmul.mubr.f32.gmra.mrb[0].mxu0 %v386
    %v453 = vpop.f32.mrb[0].mxu0
    %v454 = vadd.f32 0.0, %v453
    %v455 = vpop.f32.mrb[0].mxu0
    %v456 = vadd.f32 0.0, %v455
    %457 = vdwg.mxu0
    %458 = vmatprep.subr.mxu0 %v59
    %459 = vmatpush1.msra.mxu0 %v58
    %460 = vmatprep.subr.mxu0 %v63
    %461 = vmatpush1.msra.mxu0 %v62
    %462 = vmatprep.subr.mxu0 %v67
    %463 = vmatpush1.msra.mxu0 %v66
    %464 = vmatprep.subr.mxu0 %v71
    %465 = vmatpush1.msra.mxu0 %v70
    %466 = vmatprep.subr.mxu0 %v75
    %467 = vmatpush1.msra.mxu0 %v74
    %468 = vmatprep.subr.mxu0 %v79
    %469 = vmatpush1.msra.mxu0 %v78
    %470 = vmatprep.subr.mxu0 %v83
    %471 = vmatpush1.msra.mxu0 %v82
    %472 = vmatprep.subr.mxu0 %v87
    %473 = vmatpush1.msra.mxu0 %v86
    %474 = vmatprep.subr.mxu0 %v91
    %475 = vmatpush1.msra.mxu0 %v90
    %476 = vmatprep.subr.mxu0 %v95
    %477 = vmatpush1.msra.mxu0 %v94
    %478 = vmatprep.subr.mxu0 %v99
    %479 = vmatpush1.msra.mxu0 %v98
    %480 = vmatprep.subr.mxu0 %v103
    %481 = vmatpush1.msra.mxu0 %v102
    %482 = vmatprep.subr.mxu0 %v107
    %483 = vmatpush1.msra.mxu0 %v106
    %484 = vmatprep.subr.mxu0 %v111
    %485 = vmatpush1.msra.mxu0 %v110
    %486 = vmatprep.subr.mxu0 %v115
    %487 = vmatpush1.msra.mxu0 %v114
    %488 = vmatprep.subr.mxu0 %v119
    %489 = vmatpush1.msra.mxu0 %v118
    %490 = vmatprep.subr.mxu0 0.0
    %491 = vmatpush1.msra.mxu0 0.0
    %492 = vmatprep.subr.mxu0 0.0
    %493 = vmatpush1.msra.mxu0 0.0
    %494 = vmatprep.subr.mxu0 0.0
    %495 = vmatpush1.msra.mxu0 0.0
    %496 = vmatprep.subr.mxu0 0.0
    %497 = vmatpush1.msra.mxu0 0.0
    %498 = vmatprep.subr.mxu0 0.0
    %499 = vmatpush1.msra.mxu0 0.0
    %500 = vmatprep.subr.mxu0 0.0
    %501 = vmatpush1.msra.mxu0 0.0
    %502 = vmatprep.subr.mxu0 0.0
    %503 = vmatpush1.msra.mxu0 0.0
    %504 = vmatprep.subr.mxu0 0.0
    %505 = vmatpush1.msra.mxu0 0.0
    %506 = vmatprep.subr.mxu0 0.0
    %507 = vmatpush1.msra.mxu0 0.0
    %508 = vmatprep.subr.mxu0 0.0
    %509 = vmatpush1.msra.mxu0 0.0
    %510 = vmatprep.subr.mxu0 0.0
    %511 = vmatpush1.msra.mxu0 0.0
    %512 = vmatprep.subr.mxu0 0.0
    %513 = vmatpush1.msra.mxu0 0.0
    %514 = vmatprep.subr.mxu0 0.0
    %515 = vmatpush1.msra.mxu0 0.0
    %516 = vmatprep.subr.mxu0 0.0
    %517 = vmatpush1.msra.mxu0 0.0
    %518 = vmatprep.subr.mxu0 0.0
    %519 = vmatpush1.msra.mxu0 0.0
    %520 = vmatprep.subr.mxu0 0.0
    %521 = vmatpush1.msra.mxu0 0.0
    %522 = vmatprep.mubr.f32.mxu0 0.0
    %523 = vmatmul.mubr.f32.gmra.mrb[0].mxu0 %v386
    %v524 = vpop.f32.mrb[0].mxu0
    %v525 = vadd.f32 0.0, %v524
    %v526 = vpop.f32.mrb[0].mxu0
    %v527 = vadd.f32 0.0, %v526
    %528 = vdwg.mxu0
    %v529 = vadd.f32 %v525, %v125
    %v530 = vadd.f32 %v527, %v129
    %v531 = vxor.u32 %v529, 2147483648
    %v532 = vxor.u32 %v530, 2147483648
    %v533 = vmul.f32 %v531, 1.442695
    %v534 = vpow.pop %v533
    %v535 = vmul.f32 %v532, 1.442695
    %v536 = vpow.pop %v535
    %v537 = vadd.f32 %v534, 1.0
    %v538 = vadd.f32 %v536, 1.0
    %v539 = vrcp.pop %v537
    %v540 = vmul.f32 1.0, %v539
    %v541 = vrcp.pop %v538
    %v542 = vmul.f32 1.0, %v541
    %v543 = vtanh.pop %v530
    %v544 = vmul.f32 %v540, %v337
    %546 = vrot.lane.b32.xlu0 %v543, 64
    %v547 = vpop.permute.xlu0 %546
    %v549 = vmul.f32 %v540, %v547
    %551 = vrot.lane.b32.xlu0 %v549, 64
    %v552 = vpop.permute.xlu0 %551
    %v554 = vadd.f32 %v544, %v552
    %v555 = vtanh.pop %v554
    %557 = vrot.lane.b32.xlu0 %v555, 64
    %v558 = vpop.permute.xlu0 %557
    %v560 = vmul.f32 %v542, %v558
    %562 = vrot.lane.b32.xlu0 %v560, 64
    %v563 = vpop.permute.xlu0 %562
    %565 = vst.msk [vmem:[#allocation2] sm:$0xff] %vm348, %v563
    %s566 = scalar_lea.vmem [#allocation4], 32
    %v567 = vld [vmem:[%s566] sm:$0xff]
    %v568 = vld [vmem:[%s566 + $0x8] sm:$0xff]
    %v569 = vadd.f32 %v567, %v454
    %v570 = vadd.f32 %v568, %v456
    %v571 = vxor.u32 %v569, 2147483648
    %v572 = vxor.u32 %v570, 2147483648
    %v573 = vmul.f32 %v571, 1.442695
    %v574 = vpow.pop %v573
    %v575 = vmul.f32 %v572, 1.442695
    %v576 = vpow.pop %v575
    %v577 = vadd.f32 %v574, 1.0
    %v578 = vadd.f32 %v576, 1.0
    %v579 = vrcp.pop %v577
    %v580 = vmul.f32 1.0, %v579
    %v581 = vrcp.pop %v578
    %v582 = vmul.f32 1.0, %v581
    %v583 = vtanh.pop %v570
    %v584 = vmul.f32 %v580, %v378
    %586 = vrot.lane.b32.xlu0 %v583, 64
    %v587 = vpop.permute.xlu0 %586
    %v589 = vmul.f32 %v580, %v587
    %591 = vrot.lane.b32.xlu0 %v589, 64
    %v592 = vpop.permute.xlu0 %591
    %v594 = vadd.f32 %v584, %v592
    %v595 = vtanh.pop %v594
    %597 = vrot.lane.b32.xlu0 %v595, 64
    %v598 = vpop.permute.xlu0 %597
    %v600 = vmul.f32 %v582, %v598
    %601 = vst.msk [vmem:[#allocation2] sm:$0xff] %vm167, %v600
    %v602 = vld [vmem:[#allocation2] sm:$0xff]
    %603 = vmatprep.subr.mxu0 %v57
    %604 = vmatpush1.msra.mxu0 %v56
    %605 = vmatprep.subr.mxu0 %v61
    %606 = vmatpush1.msra.mxu0 %v60
    %607 = vmatprep.subr.mxu0 %v65
    %608 = vmatpush1.msra.mxu0 %v64
    %609 = vmatprep.subr.mxu0 %v69
    %610 = vmatpush1.msra.mxu0 %v68
    %611 = vmatprep.subr.mxu0 %v73
    %612 = vmatpush1.msra.mxu0 %v72
    %613 = vmatprep.subr.mxu0 %v77
    %614 = vmatpush1.msra.mxu0 %v76
    %615 = vmatprep.subr.mxu0 %v81
    %616 = vmatpush1.msra.mxu0 %v80
    %617 = vmatprep.subr.mxu0 %v85
    %618 = vmatpush1.msra.mxu0 %v84
    %619 = vmatprep.subr.mxu0 %v89
    %620 = vmatpush1.msra.mxu0 %v88
    %621 = vmatprep.subr.mxu0 %v93
    %622 = vmatpush1.msra.mxu0 %v92
    %623 = vmatprep.subr.mxu0 %v97
    %624 = vmatpush1.msra.mxu0 %v96
    %625 = vmatprep.subr.mxu0 %v101
    %626 = vmatpush1.msra.mxu0 %v100
    %627 = vmatprep.subr.mxu0 %v105
    %628 = vmatpush1.msra.mxu0 %v104
    %629 = vmatprep.subr.mxu0 %v109
    %630 = vmatpush1.msra.mxu0 %v108
    %631 = vmatprep.subr.mxu0 %v113
    %632 = vmatpush1.msra.mxu0 %v112
    %633 = vmatprep.subr.mxu0 %v117
    %634 = vmatpush1.msra.mxu0 %v116
    %635 = vmatprep.subr.mxu0 0.0
    %636 = vmatpush1.msra.mxu0 0.0
    %637 = vmatprep.subr.mxu0 0.0
    %638 = vmatpush1.msra.mxu0 0.0
    %639 = vmatprep.subr.mxu0 0.0
    %640 = vmatpush1.msra.mxu0 0.0
    %641 = vmatprep.subr.mxu0 0.0
    %642 = vmatpush1.msra.mxu0 0.0
    %643 = vmatprep.subr.mxu0 0.0
    %644 = vmatpush1.msra.mxu0 0.0
    %645 = vmatprep.subr.mxu0 0.0
    %646 = vmatpush1.msra.mxu0 0.0
    %647 = vmatprep.subr.mxu0 0.0
    %648 = vmatpush1.msra.mxu0 0.0
    %649 = vmatprep.subr.mxu0 0.0
    %650 = vmatpush1.msra.mxu0 0.0
    %651 = vmatprep.subr.mxu0 0.0
    %652 = vmatpush1.msra.mxu0 0.0
    %653 = vmatprep.subr.mxu0 0.0
    %654 = vmatpush1.msra.mxu0 0.0
    %655 = vmatprep.subr.mxu0 0.0
    %656 = vmatpush1.msra.mxu0 0.0
    %657 = vmatprep.subr.mxu0 0.0
    %658 = vmatpush1.msra.mxu0 0.0
    %659 = vmatprep.subr.mxu0 0.0
    %660 = vmatpush1.msra.mxu0 0.0
    %661 = vmatprep.subr.mxu0 0.0
    %662 = vmatpush1.msra.mxu0 0.0
    %663 = vmatprep.subr.mxu0 0.0
    %664 = vmatpush1.msra.mxu0 0.0
    %665 = vmatprep.subr.mxu0 0.0
    %666 = vmatpush1.msra.mxu0 0.0
    %667 = vmatprep.mubr.f32.mxu0 0.0
    %668 = vmatmul.mubr.f32.gmra.mrb[0].mxu0 %v602
    %v669 = vpop.f32.mrb[0].mxu0
    %v670 = vadd.f32 0.0, %v669
    %v671 = vpop.f32.mrb[0].mxu0
    %v672 = vadd.f32 0.0, %v671
    %673 = vdwg.mxu0
    %674 = vmatprep.subr.mxu0 %v59
    %675 = vmatpush1.msra.mxu0 %v58
    %676 = vmatprep.subr.mxu0 %v63
    %677 = vmatpush1.msra.mxu0 %v62
    %678 = vmatprep.subr.mxu0 %v67
    %679 = vmatpush1.msra.mxu0 %v66
    %680 = vmatprep.subr.mxu0 %v71
    %681 = vmatpush1.msra.mxu0 %v70
    %682 = vmatprep.subr.mxu0 %v75
    %683 = vmatpush1.msra.mxu0 %v74
    %684 = vmatprep.subr.mxu0 %v79
    %685 = vmatpush1.msra.mxu0 %v78
    %686 = vmatprep.subr.mxu0 %v83
    %687 = vmatpush1.msra.mxu0 %v82
    %688 = vmatprep.subr.mxu0 %v87
    %689 = vmatpush1.msra.mxu0 %v86
    %690 = vmatprep.subr.mxu0 %v91
    %691 = vmatpush1.msra.mxu0 %v90
    %692 = vmatprep.subr.mxu0 %v95
    %693 = vmatpush1.msra.mxu0 %v94
    %694 = vmatprep.subr.mxu0 %v99
    %695 = vmatpush1.msra.mxu0 %v98
    %696 = vmatprep.subr.mxu0 %v103
    %697 = vmatpush1.msra.mxu0 %v102
    %698 = vmatprep.subr.mxu0 %v107
    %699 = vmatpush1.msra.mxu0 %v106
    %700 = vmatprep.subr.mxu0 %v111
    %701 = vmatpush1.msra.mxu0 %v110
    %702 = vmatprep.subr.mxu0 %v115
    %703 = vmatpush1.msra.mxu0 %v114
    %704 = vmatprep.subr.mxu0 %v119
    %705 = vmatpush1.msra.mxu0 %v118
    %706 = vmatprep.subr.mxu0 0.0
    %707 = vmatpush1.msra.mxu0 0.0
    %708 = vmatprep.subr.mxu0 0.0
    %709 = vmatpush1.msra.mxu0 0.0
    %710 = vmatprep.subr.mxu0 0.0
    %711 = vmatpush1.msra.mxu0 0.0
    %712 = vmatprep.subr.mxu0 0.0
    %713 = vmatpush1.msra.mxu0 0.0
    %714 = vmatprep.subr.mxu0 0.0
    %715 = vmatpush1.msra.mxu0 0.0
    %716 = vmatprep.subr.mxu0 0.0
    %717 = vmatpush1.msra.mxu0 0.0
    %718 = vmatprep.subr.mxu0 0.0
    %719 = vmatpush1.msra.mxu0 0.0
    %720 = vmatprep.subr.mxu0 0.0
    %721 = vmatpush1.msra.mxu0 0.0
    %722 = vmatprep.subr.mxu0 0.0
    %723 = vmatpush1.msra.mxu0 0.0
    %724 = vmatprep.subr.mxu0 0.0
    %725 = vmatpush1.msra.mxu0 0.0
    %726 = vmatprep.subr.mxu0 0.0
    %727 = vmatpush1.msra.mxu0 0.0
    %728 = vmatprep.subr.mxu0 0.0
    %729 = vmatpush1.msra.mxu0 0.0
    %730 = vmatprep.subr.mxu0 0.0
    %731 = vmatpush1.msra.mxu0 0.0
    %732 = vmatprep.subr.mxu0 0.0
    %733 = vmatpush1.msra.mxu0 0.0
    %734 = vmatprep.subr.mxu0 0.0
    %735 = vmatpush1.msra.mxu0 0.0
    %736 = vmatprep.subr.mxu0 0.0
    %737 = vmatpush1.msra.mxu0 0.0
    %738 = vmatprep.mubr.f32.mxu0 0.0
    %739 = vmatmul.mubr.f32.gmra.mrb[0].mxu0 %v602
    %v740 = vpop.f32.mrb[0].mxu0
    %v741 = vadd.f32 0.0, %v740
    %v742 = vpop.f32.mrb[0].mxu0
    %v743 = vadd.f32 0.0, %v742
    %744 = vdwg.mxu0
    %v745 = vadd.f32 %v741, %v125
    %v746 = vadd.f32 %v743, %v129
    %v747 = vxor.u32 %v745, 2147483648
    %v748 = vxor.u32 %v746, 2147483648
    %v749 = vmul.f32 %v747, 1.442695
    %v750 = vpow.pop %v749
    %v751 = vmul.f32 %v748, 1.442695
    %v752 = vpow.pop %v751
    %v753 = vadd.f32 %v750, 1.0
    %v754 = vadd.f32 %v752, 1.0
    %v755 = vrcp.pop %v753
    %v756 = vmul.f32 1.0, %v755
    %v757 = vrcp.pop %v754
    %v758 = vmul.f32 1.0, %v757
    %v759 = vtanh.pop %v746
    %v760 = vmul.f32 %v756, %v554
    %762 = vrot.lane.b32.xlu0 %v759, 64
    %v763 = vpop.permute.xlu0 %762
    %v765 = vmul.f32 %v756, %v763
    %767 = vrot.lane.b32.xlu0 %v765, 64
    %v768 = vpop.permute.xlu0 %767
    %v770 = vadd.f32 %v760, %v768
    %v771 = vtanh.pop %v770
    %773 = vrot.lane.b32.xlu0 %v771, 64
    %v774 = vpop.permute.xlu0 %773
    %v776 = vmul.f32 %v758, %v774
    %778 = vrot.lane.b32.xlu0 %v776, 64
    %v779 = vpop.permute.xlu0 %778
    %781 = vst.msk [vmem:[#allocation2] sm:$0xff] %vm348, %v779
    %s782 = scalar_lea.vmem [#allocation4], 48
    %v783 = vld [vmem:[%s782] sm:$0xff]
    %v784 = vld [vmem:[%s782 + $0x8] sm:$0xff]
    %v785 = vadd.f32 %v783, %v670
    %v786 = vadd.f32 %v784, %v672
    %v787 = vxor.u32 %v785, 2147483648
    %v788 = vxor.u32 %v786, 2147483648
    %v789 = vmul.f32 %v787, 1.442695
    %v790 = vpow.pop %v789
    %v791 = vmul.f32 %v788, 1.442695
    %v792 = vpow.pop %v791
    %v793 = vadd.f32 %v790, 1.0
    %v794 = vadd.f32 %v792, 1.0
    %v795 = vrcp.pop %v793
    %v796 = vmul.f32 1.0, %v795
    %v797 = vrcp.pop %v794
    %v798 = vmul.f32 1.0, %v797
    %v799 = vtanh.pop %v786
    %v800 = vmul.f32 %v796, %v594
    %802 = vrot.lane.b32.xlu0 %v799, 64
    %v803 = vpop.permute.xlu0 %802
    %v805 = vmul.f32 %v796, %v803
    %807 = vrot.lane.b32.xlu0 %v805, 64
    %v808 = vpop.permute.xlu0 %807
    %v810 = vadd.f32 %v800, %v808
    %v811 = vtanh.pop %v810
    %813 = vrot.lane.b32.xlu0 %v811, 64
    %v814 = vpop.permute.xlu0 %813
    %v816 = vmul.f32 %v798, %v814
    %817 = vst.msk [vmem:[#allocation2] sm:$0xff] %vm167, %v816
    %v818 = vld [vmem:[#allocation2] sm:$0xff]
    %819 = vmatprep.subr.mxu0 %v57
    %820 = vmatpush1.msra.mxu0 %v56
    %821 = vmatprep.subr.mxu0 %v61
    %822 = vmatpush1.msra.mxu0 %v60
    %823 = vmatprep.subr.mxu0 %v65
    %824 = vmatpush1.msra.mxu0 %v64
    %825 = vmatprep.subr.mxu0 %v69
    %826 = vmatpush1.msra.mxu0 %v68
    %827 = vmatprep.subr.mxu0 %v73
    %828 = vmatpush1.msra.mxu0 %v72
    %829 = vmatprep.subr.mxu0 %v77
    %830 = vmatpush1.msra.mxu0 %v76
    %831 = vmatprep.subr.mxu0 %v81
    %832 = vmatpush1.msra.mxu0 %v80
    %833 = vmatprep.subr.mxu0 %v85
    %834 = vmatpush1.msra.mxu0 %v84
    %835 = vmatprep.subr.mxu0 %v89
    %836 = vmatpush1.msra.mxu0 %v88
    %837 = vmatprep.subr.mxu0 %v93
    %838 = vmatpush1.msra.mxu0 %v92
    %839 = vmatprep.subr.mxu0 %v97
    %840 = vmatpush1.msra.mxu0 %v96
    %841 = vmatprep.subr.mxu0 %v101
    %842 = vmatpush1.msra.mxu0 %v100
    %843 = vmatprep.subr.mxu0 %v105
    %844 = vmatpush1.msra.mxu0 %v104
    %845 = vmatprep.subr.mxu0 %v109
    %846 = vmatpush1.msra.mxu0 %v108
    %847 = vmatprep.subr.mxu0 %v113
    %848 = vmatpush1.msra.mxu0 %v112
    %849 = vmatprep.subr.mxu0 %v117
    %850 = vmatpush1.msra.mxu0 %v116
    %851 = vmatprep.subr.mxu0 0.0
    %852 = vmatpush1.msra.mxu0 0.0
    %853 = vmatprep.subr.mxu0 0.0
    %854 = vmatpush1.msra.mxu0 0.0
    %855 = vmatprep.subr.mxu0 0.0
    %856 = vmatpush1.msra.mxu0 0.0
    %857 = vmatprep.subr.mxu0 0.0
    %858 = vmatpush1.msra.mxu0 0.0
    %859 = vmatprep.subr.mxu0 0.0
    %860 = vmatpush1.msra.mxu0 0.0
    %861 = vmatprep.subr.mxu0 0.0
    %862 = vmatpush1.msra.mxu0 0.0
    %863 = vmatprep.subr.mxu0 0.0
    %864 = vmatpush1.msra.mxu0 0.0
    %865 = vmatprep.subr.mxu0 0.0
    %866 = vmatpush1.msra.mxu0 0.0
    %867 = vmatprep.subr.mxu0 0.0
    %868 = vmatpush1.msra.mxu0 0.0
    %869 = vmatprep.subr.mxu0 0.0
    %870 = vmatpush1.msra.mxu0 0.0
    %871 = vmatprep.subr.mxu0 0.0
    %872 = vmatpush1.msra.mxu0 0.0
    %873 = vmatprep.subr.mxu0 0.0
    %874 = vmatpush1.msra.mxu0 0.0
    %875 = vmatprep.subr.mxu0 0.0
    %876 = vmatpush1.msra.mxu0 0.0
    %877 = vmatprep.subr.mxu0 0.0
    %878 = vmatpush1.msra.mxu0 0.0
    %879 = vmatprep.subr.mxu0 0.0
    %880 = vmatpush1.msra.mxu0 0.0
    %881 = vmatprep.subr.mxu0 0.0
    %882 = vmatpush1.msra.mxu0 0.0
    %883 = vmatprep.mubr.f32.mxu0 0.0
    %884 = vmatmul.mubr.f32.gmra.mrb[0].mxu0 %v818
    %v885 = vpop.f32.mrb[0].mxu0
    %v886 = vadd.f32 0.0, %v885
    %v887 = vpop.f32.mrb[0].mxu0
    %v888 = vadd.f32 0.0, %v887
    %889 = vdwg.mxu0
    %890 = vmatprep.subr.mxu0 %v59
    %891 = vmatpush1.msra.mxu0 %v58
    %892 = vmatprep.subr.mxu0 %v63
    %893 = vmatpush1.msra.mxu0 %v62
    %894 = vmatprep.subr.mxu0 %v67
    %895 = vmatpush1.msra.mxu0 %v66
    %896 = vmatprep.subr.mxu0 %v71
    %897 = vmatpush1.msra.mxu0 %v70
    %898 = vmatprep.subr.mxu0 %v75
    %899 = vmatpush1.msra.mxu0 %v74
    %900 = vmatprep.subr.mxu0 %v79
    %901 = vmatpush1.msra.mxu0 %v78
    %902 = vmatprep.subr.mxu0 %v83
    %903 = vmatpush1.msra.mxu0 %v82
    %904 = vmatprep.subr.mxu0 %v87
    %905 = vmatpush1.msra.mxu0 %v86
    %906 = vmatprep.subr.mxu0 %v91
    %907 = vmatpush1.msra.mxu0 %v90
    %908 = vmatprep.subr.mxu0 %v95
    %909 = vmatpush1.msra.mxu0 %v94
    %910 = vmatprep.subr.mxu0 %v99
    %911 = vmatpush1.msra.mxu0 %v98
    %912 = vmatprep.subr.mxu0 %v103
    %913 = vmatpush1.msra.mxu0 %v102
    %914 = vmatprep.subr.mxu0 %v107
    %915 = vmatpush1.msra.mxu0 %v106
    %916 = vmatprep.subr.mxu0 %v111
    %917 = vmatpush1.msra.mxu0 %v110
    %918 = vmatprep.subr.mxu0 %v115
    %919 = vmatpush1.msra.mxu0 %v114
    %920 = vmatprep.subr.mxu0 %v119
    %921 = vmatpush1.msra.mxu0 %v118
    %922 = vmatprep.subr.mxu0 0.0
    %923 = vmatpush1.msra.mxu0 0.0
    %924 = vmatprep.subr.mxu0 0.0
    %925 = vmatpush1.msra.mxu0 0.0
    %926 = vmatprep.subr.mxu0 0.0
    %927 = vmatpush1.msra.mxu0 0.0
    %928 = vmatprep.subr.mxu0 0.0
    %929 = vmatpush1.msra.mxu0 0.0
    %930 = vmatprep.subr.mxu0 0.0
    %931 = vmatpush1.msra.mxu0 0.0
    %932 = vmatprep.subr.mxu0 0.0
    %933 = vmatpush1.msra.mxu0 0.0
    %934 = vmatprep.subr.mxu0 0.0
    %935 = vmatpush1.msra.mxu0 0.0
    %936 = vmatprep.subr.mxu0 0.0
    %937 = vmatpush1.msra.mxu0 0.0
    %938 = vmatprep.subr.mxu0 0.0
    %939 = vmatpush1.msra.mxu0 0.0
    %940 = vmatprep.subr.mxu0 0.0
    %941 = vmatpush1.msra.mxu0 0.0
    %942 = vmatprep.subr.mxu0 0.0
    %943 = vmatpush1.msra.mxu0 0.0
    %944 = vmatprep.subr.mxu0 0.0
    %945 = vmatpush1.msra.mxu0 0.0
    %946 = vmatprep.subr.mxu0 0.0
    %947 = vmatpush1.msra.mxu0 0.0
    %948 = vmatprep.subr.mxu0 0.0
    %949 = vmatpush1.msra.mxu0 0.0
    %950 = vmatprep.subr.mxu0 0.0
    %951 = vmatpush1.msra.mxu0 0.0
    %952 = vmatprep.subr.mxu0 0.0
    %953 = vmatpush1.msra.mxu0 0.0
    %954 = vmatprep.mubr.f32.mxu0 0.0
    %955 = vmatmul.mubr.f32.gmra.mrb[0].mxu0 %v818
    %v956 = vpop.f32.mrb[0].mxu0
    %v957 = vadd.f32 0.0, %v956
    %v958 = vpop.f32.mrb[0].mxu0
    %v959 = vadd.f32 0.0, %v958
    %960 = vdwg.mxu0
    %v961 = vadd.f32 %v957, %v125
    %v962 = vadd.f32 %v959, %v129
    %v963 = vxor.u32 %v961, 2147483648
    %v964 = vxor.u32 %v962, 2147483648
    %v965 = vmul.f32 %v963, 1.442695
    %v966 = vpow.pop %v965
    %v967 = vmul.f32 %v964, 1.442695
    %v968 = vpow.pop %v967
    %v969 = vadd.f32 %v966, 1.0
    %v970 = vadd.f32 %v968, 1.0
    %v971 = vrcp.pop %v969
    %v972 = vmul.f32 1.0, %v971
    %v973 = vrcp.pop %v970
    %v974 = vmul.f32 1.0, %v973
    %v975 = vtanh.pop %v962
    %v976 = vmul.f32 %v972, %v770
    %978 = vrot.lane.b32.xlu0 %v975, 64
    %v979 = vpop.permute.xlu0 %978
    %v981 = vmul.f32 %v972, %v979
    %983 = vrot.lane.b32.xlu0 %v981, 64
    %v984 = vpop.permute.xlu0 %983
    %v986 = vadd.f32 %v976, %v984
    %v987 = vtanh.pop %v986
    %989 = vrot.lane.b32.xlu0 %v987, 64
    %v990 = vpop.permute.xlu0 %989
    %v992 = vmul.f32 %v974, %v990
    %994 = vrot.lane.b32.xlu0 %v992, 64
    %v995 = vpop.permute.xlu0 %994
    %997 = vst.msk [vmem:[#allocation2] sm:$0xff] %vm348, %v995
    %s998 = scalar_lea.vmem [#allocation4], 64
    %v999 = vld [vmem:[%s998] sm:$0xff]
    %v1000 = vld [vmem:[%s998 + $0x8] sm:$0xff]
    %v1001 = vadd.f32 %v999, %v886
    %v1002 = vadd.f32 %v1000, %v888
    %v1003 = vxor.u32 %v1001, 2147483648
    %v1004 = vxor.u32 %v1002, 2147483648
    %v1005 = vmul.f32 %v1003, 1.442695
    %v1006 = vpow.pop %v1005
    %v1007 = vmul.f32 %v1004, 1.442695
    %v1008 = vpow.pop %v1007
    %v1009 = vadd.f32 %v1006, 1.0
    %v1010 = vadd.f32 %v1008, 1.0
    %v1011 = vrcp.pop %v1009
    %v1012 = vmul.f32 1.0, %v1011
    %v1013 = vrcp.pop %v1010
    %v1014 = vmul.f32 1.0, %v1013
    %v1015 = vtanh.pop %v1002
    %v1016 = vmul.f32 %v1012, %v810
    %1018 = vrot.lane.b32.xlu0 %v1015, 64
    %v1019 = vpop.permute.xlu0 %1018
    %v1021 = vmul.f32 %v1012, %v1019
    %1023 = vrot.lane.b32.xlu0 %v1021, 64
    %v1024 = vpop.permute.xlu0 %1023
    %v1026 = vadd.f32 %v1016, %v1024
    %v1027 = vtanh.pop %v1026
    %1029 = vrot.lane.b32.xlu0 %v1027, 64
    %v1030 = vpop.permute.xlu0 %1029
    %v1032 = vmul.f32 %v1014, %v1030
    %1033 = vst.msk [vmem:[#allocation2] sm:$0xff] %vm167, %v1032
    %v1034 = vld [vmem:[#allocation2] sm:$0xff]
    %1035 = vmatprep.subr.mxu0 %v57
    %1036 = vmatpush1.msra.mxu0 %v56
    %1037 = vmatprep.subr.mxu0 %v61
    %1038 = vmatpush1.msra.mxu0 %v60
    %1039 = vmatprep.subr.mxu0 %v65
    %1040 = vmatpush1.msra.mxu0 %v64
    %1041 = vmatprep.subr.mxu0 %v69
    %1042 = vmatpush1.msra.mxu0 %v68
    %1043 = vmatprep.subr.mxu0 %v73
    %1044 = vmatpush1.msra.mxu0 %v72
    %1045 = vmatprep.subr.mxu0 %v77
    %1046 = vmatpush1.msra.mxu0 %v76
    %1047 = vmatprep.subr.mxu0 %v81
    %1048 = vmatpush1.msra.mxu0 %v80
    %1049 = vmatprep.subr.mxu0 %v85
    %1050 = vmatpush1.msra.mxu0 %v84
    %1051 = vmatprep.subr.mxu0 %v89
    %1052 = vmatpush1.msra.mxu0 %v88
    %1053 = vmatprep.subr.mxu0 %v93
    %1054 = vmatpush1.msra.mxu0 %v92
    %1055 = vmatprep.subr.mxu0 %v97
    %1056 = vmatpush1.msra.mxu0 %v96
    %1057 = vmatprep.subr.mxu0 %v101
    %1058 = vmatpush1.msra.mxu0 %v100
    %1059 = vmatprep.subr.mxu0 %v105
    %1060 = vmatpush1.msra.mxu0 %v104
    %1061 = vmatprep.subr.mxu0 %v109
    %1062 = vmatpush1.msra.mxu0 %v108
    %1063 = vmatprep.subr.mxu0 %v113
    %1064 = vmatpush1.msra.mxu0 %v112
    %1065 = vmatprep.subr.mxu0 %v117
    %1066 = vmatpush1.msra.mxu0 %v116
    %1067 = vmatprep.subr.mxu0 0.0
    %1068 = vmatpush1.msra.mxu0 0.0
    %1069 = vmatprep.subr.mxu0 0.0
    %1070 = vmatpush1.msra.mxu0 0.0
    %1071 = vmatprep.subr.mxu0 0.0
    %1072 = vmatpush1.msra.mxu0 0.0
    %1073 = vmatprep.subr.mxu0 0.0
    %1074 = vmatpush1.msra.mxu0 0.0
    %1075 = vmatprep.subr.mxu0 0.0
    %1076 = vmatpush1.msra.mxu0 0.0
    %1077 = vmatprep.subr.mxu0 0.0
    %1078 = vmatpush1.msra.mxu0 0.0
    %1079 = vmatprep.subr.mxu0 0.0
    %1080 = vmatpush1.msra.mxu0 0.0
    %1081 = vmatprep.subr.mxu0 0.0
    %1082 = vmatpush1.msra.mxu0 0.0
    %1083 = vmatprep.subr.mxu0 0.0
    %1084 = vmatpush1.msra.mxu0 0.0
    %1085 = vmatprep.subr.mxu0 0.0
    %1086 = vmatpush1.msra.mxu0 0.0
    %1087 = vmatprep.subr.mxu0 0.0
    %1088 = vmatpush1.msra.mxu0 0.0
    %1089 = vmatprep.subr.mxu0 0.0
    %1090 = vmatpush1.msra.mxu0 0.0
    %1091 = vmatprep.subr.mxu0 0.0
    %1092 = vmatpush1.msra.mxu0 0.0
    %1093 = vmatprep.subr.mxu0 0.0
    %1094 = vmatpush1.msra.mxu0 0.0
    %1095 = vmatprep.subr.mxu0 0.0
    %1096 = vmatpush1.msra.mxu0 0.0
    %1097 = vmatprep.subr.mxu0 0.0
    %1098 = vmatpush1.msra.mxu0 0.0
    %1099 = vmatprep.mubr.f32.mxu0 0.0
    %1100 = vmatmul.mubr.f32.gmra.mrb[0].mxu0 %v1034
    %v1101 = vpop.f32.mrb[0].mxu0
    %v1102 = vadd.f32 0.0, %v1101
    %v1103 = vpop.f32.mrb[0].mxu0
    %v1104 = vadd.f32 0.0, %v1103
    %1105 = vdwg.mxu0
    %1106 = vmatprep.subr.mxu0 %v59
    %1107 = vmatpush1.msra.mxu0 %v58
    %1108 = vmatprep.subr.mxu0 %v63
    %1109 = vmatpush1.msra.mxu0 %v62
    %1110 = vmatprep.subr.mxu0 %v67
    %1111 = vmatpush1.msra.mxu0 %v66
    %1112 = vmatprep.subr.mxu0 %v71
    %1113 = vmatpush1.msra.mxu0 %v70
    %1114 = vmatprep.subr.mxu0 %v75
    %1115 = vmatpush1.msra.mxu0 %v74
    %1116 = vmatprep.subr.mxu0 %v79
    %1117 = vmatpush1.msra.mxu0 %v78
    %1118 = vmatprep.subr.mxu0 %v83
    %1119 = vmatpush1.msra.mxu0 %v82
    %1120 = vmatprep.subr.mxu0 %v87
    %1121 = vmatpush1.msra.mxu0 %v86
    %1122 = vmatprep.subr.mxu0 %v91
    %1123 = vmatpush1.msra.mxu0 %v90
    %1124 = vmatprep.subr.mxu0 %v95
    %1125 = vmatpush1.msra.mxu0 %v94
    %1126 = vmatprep.subr.mxu0 %v99
    %1127 = vmatpush1.msra.mxu0 %v98
    %1128 = vmatprep.subr.mxu0 %v103
    %1129 = vmatpush1.msra.mxu0 %v102
    %1130 = vmatprep.subr.mxu0 %v107
    %1131 = vmatpush1.msra.mxu0 %v106
    %1132 = vmatprep.subr.mxu0 %v111
    %1133 = vmatpush1.msra.mxu0 %v110
    %1134 = vmatprep.subr.mxu0 %v115
    %1135 = vmatpush1.msra.mxu0 %v114
    %1136 = vmatprep.subr.mxu0 %v119
    %1137 = vmatpush1.msra.mxu0 %v118
    %1138 = vmatprep.subr.mxu0 0.0
    %1139 = vmatpush1.msra.mxu0 0.0
    %1140 = vmatprep.subr.mxu0 0.0
    %1141 = vmatpush1.msra.mxu0 0.0
    %1142 = vmatprep.subr.mxu0 0.0
    %1143 = vmatpush1.msra.mxu0 0.0
    %1144 = vmatprep.subr.mxu0 0.0
    %1145 = vmatpush1.msra.mxu0 0.0
    %1146 = vmatprep.subr.mxu0 0.0
    %1147 = vmatpush1.msra.mxu0 0.0
    %1148 = vmatprep.subr.mxu0 0.0
    %1149 = vmatpush1.msra.mxu0 0.0
    %1150 = vmatprep.subr.mxu0 0.0
    %1151 = vmatpush1.msra.mxu0 0.0
    %1152 = vmatprep.subr.mxu0 0.0
    %1153 = vmatpush1.msra.mxu0 0.0
    %1154 = vmatprep.subr.mxu0 0.0
    %1155 = vmatpush1.msra.mxu0 0.0
    %1156 = vmatprep.subr.mxu0 0.0
    %1157 = vmatpush1.msra.mxu0 0.0
    %1158 = vmatprep.subr.mxu0 0.0
    %1159 = vmatpush1.msra.mxu0 0.0
    %1160 = vmatprep.subr.mxu0 0.0
    %1161 = vmatpush1.msra.mxu0 0.0
    %1162 = vmatprep.subr.mxu0 0.0
    %1163 = vmatpush1.msra.mxu0 0.0
    %1164 = vmatprep.subr.mxu0 0.0
    %1165 = vmatpush1.msra.mxu0 0.0
    %1166 = vmatprep.subr.mxu0 0.0
    %1167 = vmatpush1.msra.mxu0 0.0
    %1168 = vmatprep.subr.mxu0 0.0
    %1169 = vmatpush1.msra.mxu0 0.0
    %1170 = vmatprep.mubr.f32.mxu0 0.0
    %1171 = vmatmul.mubr.f32.gmra.mrb[0].mxu0 %v1034
    %v1172 = vpop.f32.mrb[0].mxu0
    %v1173 = vadd.f32 0.0, %v1172
    %v1174 = vpop.f32.mrb[0].mxu0
    %v1175 = vadd.f32 0.0, %v1174
    %1176 = vdwg.mxu0
    %v1177 = vadd.f32 %v1173, %v125
    %v1178 = vadd.f32 %v1175, %v129
    %v1179 = vxor.u32 %v1177, 2147483648
    %v1180 = vxor.u32 %v1178, 2147483648
    %v1181 = vmul.f32 %v1179, 1.442695
    %v1182 = vpow.pop %v1181
    %v1183 = vmul.f32 %v1180, 1.442695
    %v1184 = vpow.pop %v1183
    %v1185 = vadd.f32 %v1182, 1.0
    %v1186 = vadd.f32 %v1184, 1.0
    %v1187 = vrcp.pop %v1185
    %v1188 = vmul.f32 1.0, %v1187
    %v1189 = vrcp.pop %v1186
    %v1190 = vmul.f32 1.0, %v1189
    %v1191 = vtanh.pop %v1178
    %v1192 = vmul.f32 %v1188, %v986
    %1194 = vrot.lane.b32.xlu0 %v1191, 64
    %v1195 = vpop.permute.xlu0 %1194
    %v1197 = vmul.f32 %v1188, %v1195
    %1199 = vrot.lane.b32.xlu0 %v1197, 64
    %v1200 = vpop.permute.xlu0 %1199
    %v1202 = vadd.f32 %v1192, %v1200
    %v1203 = vtanh.pop %v1202
    %1205 = vrot.lane.b32.xlu0 %v1203, 64
    %v1206 = vpop.permute.xlu0 %1205
    %v1208 = vmul.f32 %v1190, %v1206
    %1210 = vrot.lane.b32.xlu0 %v1208, 64
    %v1211 = vpop.permute.xlu0 %1210
    %1213 = vst.msk [vmem:[#allocation2] sm:$0xff] %vm348, %v1211
    %s1214 = scalar_lea.vmem [#allocation4], 80
    %v1215 = vld [vmem:[%s1214] sm:$0xff]
    %v1216 = vld [vmem:[%s1214 + $0x8] sm:$0xff]
    %v1217 = vadd.f32 %v1215, %v1102
    %v1218 = vadd.f32 %v1216, %v1104
    %v1219 = vxor.u32 %v1217, 2147483648
    %v1220 = vxor.u32 %v1218, 2147483648
    %v1221 = vmul.f32 %v1219, 1.442695
    %v1222 = vpow.pop %v1221
    %v1223 = vmul.f32 %v1220, 1.442695
    %v1224 = vpow.pop %v1223
    %v1225 = vadd.f32 %v1222, 1.0
    %v1226 = vadd.f32 %v1224, 1.0
    %v1227 = vrcp.pop %v1225
    %v1228 = vmul.f32 1.0, %v1227
    %v1229 = vrcp.pop %v1226
    %v1230 = vmul.f32 1.0, %v1229
    %v1231 = vtanh.pop %v1218
    %v1232 = vmul.f32 %v1228, %v1026
    %1234 = vrot.lane.b32.xlu0 %v1231, 64
    %v1235 = vpop.permute.xlu0 %1234
    %v1237 = vmul.f32 %v1228, %v1235
    %1239 = vrot.lane.b32.xlu0 %v1237, 64
    %v1240 = vpop.permute.xlu0 %1239
    %v1242 = vadd.f32 %v1232, %v1240
    %v1243 = vtanh.pop %v1242
    %1245 = vrot.lane.b32.xlu0 %v1243, 64
    %v1246 = vpop.permute.xlu0 %1245
    %v1248 = vmul.f32 %v1230, %v1246
    %1249 = vst.msk [vmem:[#allocation2] sm:$0xff] %vm167, %v1248
    %v1250 = vld [vmem:[#allocation2] sm:$0xff]
    %1251 = vmatprep.subr.mxu0 %v57
    %1252 = vmatpush1.msra.mxu0 %v56
    %1253 = vmatprep.subr.mxu0 %v61
    %1254 = vmatpush1.msra.mxu0 %v60
    %1255 = vmatprep.subr.mxu0 %v65
    %1256 = vmatpush1.msra.mxu0 %v64
    %1257 = vmatprep.subr.mxu0 %v69
    %1258 = vmatpush1.msra.mxu0 %v68
    %1259 = vmatprep.subr.mxu0 %v73
    %1260 = vmatpush1.msra.mxu0 %v72
    %1261 = vmatprep.subr.mxu0 %v77
    %1262 = vmatpush1.msra.mxu0 %v76
    %1263 = vmatprep.subr.mxu0 %v81
    %1264 = vmatpush1.msra.mxu0 %v80
    %1265 = vmatprep.subr.mxu0 %v85
    %1266 = vmatpush1.msra.mxu0 %v84
    %1267 = vmatprep.subr.mxu0 %v89
    %1268 = vmatpush1.msra.mxu0 %v88
    %1269 = vmatprep.subr.mxu0 %v93
    %1270 = vmatpush1.msra.mxu0 %v92
    %1271 = vmatprep.subr.mxu0 %v97
    %1272 = vmatpush1.msra.mxu0 %v96
    %1273 = vmatprep.subr.mxu0 %v101
    %1274 = vmatpush1.msra.mxu0 %v100
    %1275 = vmatprep.subr.mxu0 %v105
    %1276 = vmatpush1.msra.mxu0 %v104
    %1277 = vmatprep.subr.mxu0 %v109
    %1278 = vmatpush1.msra.mxu0 %v108
    %1279 = vmatprep.subr.mxu0 %v113
    %1280 = vmatpush1.msra.mxu0 %v112
    %1281 = vmatprep.subr.mxu0 %v117
    %1282 = vmatpush1.msra.mxu0 %v116
    %1283 = vmatprep.subr.mxu0 0.0
    %1284 = vmatpush1.msra.mxu0 0.0
    %1285 = vmatprep.subr.mxu0 0.0
    %1286 = vmatpush1.msra.mxu0 0.0
    %1287 = vmatprep.subr.mxu0 0.0
    %1288 = vmatpush1.msra.mxu0 0.0
    %1289 = vmatprep.subr.mxu0 0.0
    %1290 = vmatpush1.msra.mxu0 0.0
    %1291 = vmatprep.subr.mxu0 0.0
    %1292 = vmatpush1.msra.mxu0 0.0
    %1293 = vmatprep.subr.mxu0 0.0
    %1294 = vmatpush1.msra.mxu0 0.0
    %1295 = vmatprep.subr.mxu0 0.0
    %1296 = vmatpush1.msra.mxu0 0.0
    %1297 = vmatprep.subr.mxu0 0.0
    %1298 = vmatpush1.msra.mxu0 0.0
    %1299 = vmatprep.subr.mxu0 0.0
    %1300 = vmatpush1.msra.mxu0 0.0
    %1301 = vmatprep.subr.mxu0 0.0
    %1302 = vmatpush1.msra.mxu0 0.0
    %1303 = vmatprep.subr.mxu0 0.0
    %1304 = vmatpush1.msra.mxu0 0.0
    %1305 = vmatprep.subr.mxu0 0.0
    %1306 = vmatpush1.msra.mxu0 0.0
    %1307 = vmatprep.subr.mxu0 0.0
    %1308 = vmatpush1.msra.mxu0 0.0
    %1309 = vmatprep.subr.mxu0 0.0
    %1310 = vmatpush1.msra.mxu0 0.0
    %1311 = vmatprep.subr.mxu0 0.0
    %1312 = vmatpush1.msra.mxu0 0.0
    %1313 = vmatprep.subr.mxu0 0.0
    %1314 = vmatpush1.msra.mxu0 0.0
    %1315 = vmatprep.mubr.f32.mxu0 0.0
    %1316 = vmatmul.mubr.f32.gmra.mrb[0].mxu0 %v1250
    %v1317 = vpop.f32.mrb[0].mxu0
    %v1318 = vadd.f32 0.0, %v1317
    %v1319 = vpop.f32.mrb[0].mxu0
    %v1320 = vadd.f32 0.0, %v1319
    %1321 = vdwg.mxu0
    %1322 = vmatprep.subr.mxu0 %v59
    %1323 = vmatpush1.msra.mxu0 %v58
    %1324 = vmatprep.subr.mxu0 %v63
    %1325 = vmatpush1.msra.mxu0 %v62
    %1326 = vmatprep.subr.mxu0 %v67
    %1327 = vmatpush1.msra.mxu0 %v66
    %1328 = vmatprep.subr.mxu0 %v71
    %1329 = vmatpush1.msra.mxu0 %v70
    %1330 = vmatprep.subr.mxu0 %v75
    %1331 = vmatpush1.msra.mxu0 %v74
    %1332 = vmatprep.subr.mxu0 %v79
    %1333 = vmatpush1.msra.mxu0 %v78
    %1334 = vmatprep.subr.mxu0 %v83
    %1335 = vmatpush1.msra.mxu0 %v82
    %1336 = vmatprep.subr.mxu0 %v87
    %1337 = vmatpush1.msra.mxu0 %v86
    %1338 = vmatprep.subr.mxu0 %v91
    %1339 = vmatpush1.msra.mxu0 %v90
    %1340 = vmatprep.subr.mxu0 %v95
    %1341 = vmatpush1.msra.mxu0 %v94
    %1342 = vmatprep.subr.mxu0 %v99
    %1343 = vmatpush1.msra.mxu0 %v98
    %1344 = vmatprep.subr.mxu0 %v103
    %1345 = vmatpush1.msra.mxu0 %v102
    %1346 = vmatprep.subr.mxu0 %v107
    %1347 = vmatpush1.msra.mxu0 %v106
    %1348 = vmatprep.subr.mxu0 %v111
    %1349 = vmatpush1.msra.mxu0 %v110
    %1350 = vmatprep.subr.mxu0 %v115
    %1351 = vmatpush1.msra.mxu0 %v114
    %1352 = vmatprep.subr.mxu0 %v119
    %1353 = vmatpush1.msra.mxu0 %v118
    %1354 = vmatprep.subr.mxu0 0.0
    %1355 = vmatpush1.msra.mxu0 0.0
    %1356 = vmatprep.subr.mxu0 0.0
    %1357 = vmatpush1.msra.mxu0 0.0
    %1358 = vmatprep.subr.mxu0 0.0
    %1359 = vmatpush1.msra.mxu0 0.0
    %1360 = vmatprep.subr.mxu0 0.0
    %1361 = vmatpush1.msra.mxu0 0.0
    %1362 = vmatprep.subr.mxu0 0.0
    %1363 = vmatpush1.msra.mxu0 0.0
    %1364 = vmatprep.subr.mxu0 0.0
    %1365 = vmatpush1.msra.mxu0 0.0
    %1366 = vmatprep.subr.mxu0 0.0
    %1367 = vmatpush1.msra.mxu0 0.0
    %1368 = vmatprep.subr.mxu0 0.0
    %1369 = vmatpush1.msra.mxu0 0.0
    %1370 = vmatprep.subr.mxu0 0.0
    %1371 = vmatpush1.msra.mxu0 0.0
    %1372 = vmatprep.subr.mxu0 0.0
    %1373 = vmatpush1.msra.mxu0 0.0
    %1374 = vmatprep.subr.mxu0 0.0
    %1375 = vmatpush1.msra.mxu0 0.0
    %1376 = vmatprep.subr.mxu0 0.0
    %1377 = vmatpush1.msra.mxu0 0.0
    %1378 = vmatprep.subr.mxu0 0.0
    %1379 = vmatpush1.msra.mxu0 0.0
    %1380 = vmatprep.subr.mxu0 0.0
    %1381 = vmatpush1.msra.mxu0 0.0
    %1382 = vmatprep.subr.mxu0 0.0
    %1383 = vmatpush1.msra.mxu0 0.0
    %1384 = vmatprep.subr.mxu0 0.0
    %1385 = vmatpush1.msra.mxu0 0.0
    %1386 = vmatprep.mubr.f32.mxu0 0.0
    %1387 = vmatmul.mubr.f32.gmra.mrb[0].mxu0 %v1250
    %v1388 = vpop.f32.mrb[0].mxu0
    %v1389 = vadd.f32 0.0, %v1388
    %v1390 = vpop.f32.mrb[0].mxu0
    %v1391 = vadd.f32 0.0, %v1390
    %1392 = vdwg.mxu0
    %v1393 = vadd.f32 %v1389, %v125
    %v1394 = vadd.f32 %v1391, %v129
    %v1395 = vxor.u32 %v1393, 2147483648
    %v1396 = vxor.u32 %v1394, 2147483648
    %v1397 = vmul.f32 %v1395, 1.442695
    %v1398 = vpow.pop %v1397
    %v1399 = vmul.f32 %v1396, 1.442695
    %v1400 = vpow.pop %v1399
    %v1401 = vadd.f32 %v1398, 1.0
    %v1402 = vadd.f32 %v1400, 1.0
    %v1403 = vrcp.pop %v1401
    %v1404 = vmul.f32 1.0, %v1403
    %v1405 = vrcp.pop %v1402
    %v1406 = vmul.f32 1.0, %v1405
    %v1407 = vtanh.pop %v1394
    %v1408 = vmul.f32 %v1404, %v1202
    %1410 = vrot.lane.b32.xlu0 %v1407, 64
    %v1411 = vpop.permute.xlu0 %1410
    %v1413 = vmul.f32 %v1404, %v1411
    %1415 = vrot.lane.b32.xlu0 %v1413, 64
    %v1416 = vpop.permute.xlu0 %1415
    %v1418 = vadd.f32 %v1408, %v1416
    %v1419 = vtanh.pop %v1418
    %1421 = vrot.lane.b32.xlu0 %v1419, 64
    %v1422 = vpop.permute.xlu0 %1421
    %v1424 = vmul.f32 %v1406, %v1422
    %1426 = vrot.lane.b32.xlu0 %v1424, 64
    %v1427 = vpop.permute.xlu0 %1426
    %1429 = vst.msk [vmem:[#allocation2] sm:$0xff] %vm348, %v1427
    %s1430 = scalar_lea.vmem [#allocation4], 96
    %v1431 = vld [vmem:[%s1430] sm:$0xff]
    %v1432 = vld [vmem:[%s1430 + $0x8] sm:$0xff]
    %v1433 = vadd.f32 %v1431, %v1318
    %v1434 = vadd.f32 %v1432, %v1320
    %v1435 = vxor.u32 %v1433, 2147483648
    %v1436 = vxor.u32 %v1434, 2147483648
    %v1437 = vmul.f32 %v1435, 1.442695
    %v1438 = vpow.pop %v1437
    %v1439 = vmul.f32 %v1436, 1.442695
    %v1440 = vpow.pop %v1439
    %v1441 = vadd.f32 %v1438, 1.0
    %v1442 = vadd.f32 %v1440, 1.0
    %v1443 = vrcp.pop %v1441
    %v1444 = vmul.f32 1.0, %v1443
    %v1445 = vrcp.pop %v1442
    %v1446 = vmul.f32 1.0, %v1445
    %v1447 = vtanh.pop %v1434
    %v1448 = vmul.f32 %v1444, %v1242
    %1450 = vrot.lane.b32.xlu0 %v1447, 64
    %v1451 = vpop.permute.xlu0 %1450
    %v1453 = vmul.f32 %v1444, %v1451
    %1455 = vrot.lane.b32.xlu0 %v1453, 64
    %v1456 = vpop.permute.xlu0 %1455
    %v1458 = vadd.f32 %v1448, %v1456
    %v1459 = vtanh.pop %v1458
    %1461 = vrot.lane.b32.xlu0 %v1459, 64
    %v1462 = vpop.permute.xlu0 %1461
    %v1464 = vmul.f32 %v1446, %v1462
    %1465 = vst.msk [vmem:[#allocation2] sm:$0xff] %vm167, %v1464
    %v1466 = vld [vmem:[#allocation2] sm:$0xff]
    %1467 = vmatprep.subr.mxu0 %v57
    %1468 = vmatpush1.msra.mxu0 %v56
    %1469 = vmatprep.subr.mxu0 %v61
    %1470 = vmatpush1.msra.mxu0 %v60
    %1471 = vmatprep.subr.mxu0 %v65
    %1472 = vmatpush1.msra.mxu0 %v64
    %1473 = vmatprep.subr.mxu0 %v69
    %1474 = vmatpush1.msra.mxu0 %v68
    %1475 = vmatprep.subr.mxu0 %v73
    %1476 = vmatpush1.msra.mxu0 %v72
    %1477 = vmatprep.subr.mxu0 %v77
    %1478 = vmatpush1.msra.mxu0 %v76
    %1479 = vmatprep.subr.mxu0 %v81
    %1480 = vmatpush1.msra.mxu0 %v80
    %1481 = vmatprep.subr.mxu0 %v85
    %1482 = vmatpush1.msra.mxu0 %v84
    %1483 = vmatprep.subr.mxu0 %v89
    %1484 = vmatpush1.msra.mxu0 %v88
    %1485 = vmatprep.subr.mxu0 %v93
    %1486 = vmatpush1.msra.mxu0 %v92
    %1487 = vmatprep.subr.mxu0 %v97
    %1488 = vmatpush1.msra.mxu0 %v96
    %1489 = vmatprep.subr.mxu0 %v101
    %1490 = vmatpush1.msra.mxu0 %v100
    %1491 = vmatprep.subr.mxu0 %v105
    %1492 = vmatpush1.msra.mxu0 %v104
    %1493 = vmatprep.subr.mxu0 %v109
    %1494 = vmatpush1.msra.mxu0 %v108
    %1495 = vmatprep.subr.mxu0 %v113
    %1496 = vmatpush1.msra.mxu0 %v112
    %1497 = vmatprep.subr.mxu0 %v117
    %1498 = vmatpush1.msra.mxu0 %v116
    %1499 = vmatprep.subr.mxu0 0.0
    %1500 = vmatpush1.msra.mxu0 0.0
    %1501 = vmatprep.subr.mxu0 0.0
    %1502 = vmatpush1.msra.mxu0 0.0
    %1503 = vmatprep.subr.mxu0 0.0
    %1504 = vmatpush1.msra.mxu0 0.0
    %1505 = vmatprep.subr.mxu0 0.0
    %1506 = vmatpush1.msra.mxu0 0.0
    %1507 = vmatprep.subr.mxu0 0.0
    %1508 = vmatpush1.msra.mxu0 0.0
    %1509 = vmatprep.subr.mxu0 0.0
    %1510 = vmatpush1.msra.mxu0 0.0
    %1511 = vmatprep.subr.mxu0 0.0
    %1512 = vmatpush1.msra.mxu0 0.0
    %1513 = vmatprep.subr.mxu0 0.0
    %1514 = vmatpush1.msra.mxu0 0.0
    %1515 = vmatprep.subr.mxu0 0.0
    %1516 = vmatpush1.msra.mxu0 0.0
    %1517 = vmatprep.subr.mxu0 0.0
    %1518 = vmatpush1.msra.mxu0 0.0
    %1519 = vmatprep.subr.mxu0 0.0
    %1520 = vmatpush1.msra.mxu0 0.0
    %1521 = vmatprep.subr.mxu0 0.0
    %1522 = vmatpush1.msra.mxu0 0.0
    %1523 = vmatprep.subr.mxu0 0.0
    %1524 = vmatpush1.msra.mxu0 0.0
    %1525 = vmatprep.subr.mxu0 0.0
    %1526 = vmatpush1.msra.mxu0 0.0
    %1527 = vmatprep.subr.mxu0 0.0
    %1528 = vmatpush1.msra.mxu0 0.0
    %1529 = vmatprep.subr.mxu0 0.0
    %1530 = vmatpush1.msra.mxu0 0.0
    %1531 = vmatprep.mubr.f32.mxu0 0.0
    %1532 = vmatmul.mubr.f32.gmra.mrb[0].mxu0 %v1466
    %v1533 = vpop.f32.mrb[0].mxu0
    %v1534 = vadd.f32 0.0, %v1533
    %v1535 = vpop.f32.mrb[0].mxu0
    %v1536 = vadd.f32 0.0, %v1535
    %1537 = vdwg.mxu0
    %1538 = vmatprep.subr.mxu0 %v59
    %1539 = vmatpush1.msra.mxu0 %v58
    %1540 = vmatprep.subr.mxu0 %v63
    %1541 = vmatpush1.msra.mxu0 %v62
    %1542 = vmatprep.subr.mxu0 %v67
    %1543 = vmatpush1.msra.mxu0 %v66
    %1544 = vmatprep.subr.mxu0 %v71
    %1545 = vmatpush1.msra.mxu0 %v70
    %1546 = vmatprep.subr.mxu0 %v75
    %1547 = vmatpush1.msra.mxu0 %v74
    %1548 = vmatprep.subr.mxu0 %v79
    %1549 = vmatpush1.msra.mxu0 %v78
    %1550 = vmatprep.subr.mxu0 %v83
    %1551 = vmatpush1.msra.mxu0 %v82
    %1552 = vmatprep.subr.mxu0 %v87
    %1553 = vmatpush1.msra.mxu0 %v86
    %1554 = vmatprep.subr.mxu0 %v91
    %1555 = vmatpush1.msra.mxu0 %v90
    %1556 = vmatprep.subr.mxu0 %v95
    %1557 = vmatpush1.msra.mxu0 %v94
    %1558 = vmatprep.subr.mxu0 %v99
    %1559 = vmatpush1.msra.mxu0 %v98
    %1560 = vmatprep.subr.mxu0 %v103
    %1561 = vmatpush1.msra.mxu0 %v102
    %1562 = vmatprep.subr.mxu0 %v107
    %1563 = vmatpush1.msra.mxu0 %v106
    %1564 = vmatprep.subr.mxu0 %v111
    %1565 = vmatpush1.msra.mxu0 %v110
    %1566 = vmatprep.subr.mxu0 %v115
    %1567 = vmatpush1.msra.mxu0 %v114
    %1568 = vmatprep.subr.mxu0 %v119
    %1569 = vmatpush1.msra.mxu0 %v118
    %1570 = vmatprep.subr.mxu0 0.0
    %1571 = vmatpush1.msra.mxu0 0.0
    %1572 = vmatprep.subr.mxu0 0.0
    %1573 = vmatpush1.msra.mxu0 0.0
    %1574 = vmatprep.subr.mxu0 0.0
    %1575 = vmatpush1.msra.mxu0 0.0
    %1576 = vmatprep.subr.mxu0 0.0
    %1577 = vmatpush1.msra.mxu0 0.0
    %1578 = vmatprep.subr.mxu0 0.0
    %1579 = vmatpush1.msra.mxu0 0.0
    %1580 = vmatprep.subr.mxu0 0.0
    %1581 = vmatpush1.msra.mxu0 0.0
    %1582 = vmatprep.subr.mxu0 0.0
    %1583 = vmatpush1.msra.mxu0 0.0
    %1584 = vmatprep.subr.mxu0 0.0
    %1585 = vmatpush1.msra.mxu0 0.0
    %1586 = vmatprep.subr.mxu0 0.0
    %1587 = vmatpush1.msra.mxu0 0.0
    %1588 = vmatprep.subr.mxu0 0.0
    %1589 = vmatpush1.msra.mxu0 0.0
    %1590 = vmatprep.subr.mxu0 0.0
    %1591 = vmatpush1.msra.mxu0 0.0
    %1592 = vmatprep.subr.mxu0 0.0
    %1593 = vmatpush1.msra.mxu0 0.0
    %1594 = vmatprep.subr.mxu0 0.0
    %1595 = vmatpush1.msra.mxu0 0.0
    %1596 = vmatprep.subr.mxu0 0.0
    %1597 = vmatpush1.msra.mxu0 0.0
    %1598 = vmatprep.subr.mxu0 0.0
    %1599 = vmatpush1.msra.mxu0 0.0
    %1600 = vmatprep.subr.mxu0 0.0
    %1601 = vmatpush1.msra.mxu0 0.0
    %1602 = vmatprep.mubr.f32.mxu0 0.0
    %1603 = vmatmul.mubr.f32.gmra.mrb[0].mxu0 %v1466
    %v1604 = vpop.f32.mrb[0].mxu0
    %v1605 = vadd.f32 0.0, %v1604
    %v1606 = vpop.f32.mrb[0].mxu0
    %v1607 = vadd.f32 0.0, %v1606
    %1608 = vdwg.mxu0
    %v1609 = vadd.f32 %v1605, %v125
    %v1610 = vadd.f32 %v1607, %v129
    %v1611 = vxor.u32 %v1609, 2147483648
    %v1612 = vxor.u32 %v1610, 2147483648
    %v1613 = vmul.f32 %v1611, 1.442695
    %v1614 = vpow.pop %v1613
    %v1615 = vmul.f32 %v1612, 1.442695
    %v1616 = vpow.pop %v1615
    %v1617 = vadd.f32 %v1614, 1.0
    %v1618 = vadd.f32 %v1616, 1.0
    %v1619 = vrcp.pop %v1617
    %v1620 = vmul.f32 1.0, %v1619
    %v1621 = vrcp.pop %v1618
    %v1622 = vmul.f32 1.0, %v1621
    %v1623 = vtanh.pop %v1610
    %v1624 = vmul.f32 %v1620, %v1418
    %1626 = vrot.lane.b32.xlu0 %v1623, 64
    %v1627 = vpop.permute.xlu0 %1626
    %v1629 = vmul.f32 %v1620, %v1627
    %1631 = vrot.lane.b32.xlu0 %v1629, 64
    %v1632 = vpop.permute.xlu0 %1631
    %v1634 = vadd.f32 %v1624, %v1632
    %v1635 = vtanh.pop %v1634
    %1637 = vrot.lane.b32.xlu0 %v1635, 64
    %v1638 = vpop.permute.xlu0 %1637
    %v1640 = vmul.f32 %v1622, %v1638
    %1642 = vrot.lane.b32.xlu0 %v1640, 64
    %v1643 = vpop.permute.xlu0 %1642
    %1645 = vst.msk [vmem:[#allocation2] sm:$0xff] %vm348, %v1643
    %s1646 = scalar_lea.vmem [#allocation4], 112
    %v1647 = vld [vmem:[%s1646] sm:$0xff]
    %v1648 = vld [vmem:[%s1646 + $0x8] sm:$0xff]
    %v1649 = vadd.f32 %v1647, %v1534
    %v1650 = vadd.f32 %v1648, %v1536
    %v1651 = vxor.u32 %v1649, 2147483648
    %v1652 = vxor.u32 %v1650, 2147483648
    %v1653 = vmul.f32 %v1651, 1.442695
    %v1654 = vpow.pop %v1653
    %v1655 = vmul.f32 %v1652, 1.442695
    %v1656 = vpow.pop %v1655
    %v1657 = vadd.f32 %v1654, 1.0
    %v1658 = vadd.f32 %v1656, 1.0
    %v1659 = vrcp.pop %v1657
    %v1660 = vmul.f32 1.0, %v1659
    %v1661 = vrcp.pop %v1658
    %v1662 = vmul.f32 1.0, %v1661
    %v1663 = vtanh.pop %v1650
    %v1664 = vmul.f32 %v1660, %v1458
    %1666 = vrot.lane.b32.xlu0 %v1663, 64
    %v1667 = vpop.permute.xlu0 %1666
    %v1669 = vmul.f32 %v1660, %v1667
    %1671 = vrot.lane.b32.xlu0 %v1669, 64
    %v1672 = vpop.permute.xlu0 %1671
    %v1674 = vadd.f32 %v1664, %v1672
    %v1675 = vtanh.pop %v1674
    %1677 = vrot.lane.b32.xlu0 %v1675, 64
    %v1678 = vpop.permute.xlu0 %1677
    %v1680 = vmul.f32 %v1662, %v1678
    %1681 = vst.msk [vmem:[#allocation2] sm:$0xff] %vm167, %v1680
    %v1682 = vld [vmem:[#allocation2] sm:$0xff]
    %1683 = vmatprep.subr.mxu0 %v59
    %1684 = vmatpush1.msra.mxu0 %v58
    %1685 = vmatprep.subr.mxu0 %v63
    %1686 = vmatpush1.msra.mxu0 %v62
    %1687 = vmatprep.subr.mxu0 %v67
    %1688 = vmatpush1.msra.mxu0 %v66
    %1689 = vmatprep.subr.mxu0 %v71
    %1690 = vmatpush1.msra.mxu0 %v70
    %1691 = vmatprep.subr.mxu0 %v75
    %1692 = vmatpush1.msra.mxu0 %v74
    %1693 = vmatprep.subr.mxu0 %v79
    %1694 = vmatpush1.msra.mxu0 %v78
    %1695 = vmatprep.subr.mxu0 %v83
    %1696 = vmatpush1.msra.mxu0 %v82
    %1697 = vmatprep.subr.mxu0 %v87
    %1698 = vmatpush1.msra.mxu0 %v86
    %1699 = vmatprep.subr.mxu0 %v91
    %1700 = vmatpush1.msra.mxu0 %v90
    %1701 = vmatprep.subr.mxu0 %v95
    %1702 = vmatpush1.msra.mxu0 %v94
    %1703 = vmatprep.subr.mxu0 %v99
    %1704 = vmatpush1.msra.mxu0 %v98
    %1705 = vmatprep.subr.mxu0 %v103
    %1706 = vmatpush1.msra.mxu0 %v102
    %1707 = vmatprep.subr.mxu0 %v107
    %1708 = vmatpush1.msra.mxu0 %v106
    %1709 = vmatprep.subr.mxu0 %v111
    %1710 = vmatpush1.msra.mxu0 %v110
    %1711 = vmatprep.subr.mxu0 %v115
    %1712 = vmatpush1.msra.mxu0 %v114
    %1713 = vmatprep.subr.mxu0 %v119
    %1714 = vmatpush1.msra.mxu0 %v118
    %1715 = vmatprep.subr.mxu0 0.0
    %1716 = vmatpush1.msra.mxu0 0.0
    %1717 = vmatprep.subr.mxu0 0.0
    %1718 = vmatpush1.msra.mxu0 0.0
    %1719 = vmatprep.subr.mxu0 0.0
    %1720 = vmatpush1.msra.mxu0 0.0
    %1721 = vmatprep.subr.mxu0 0.0
    %1722 = vmatpush1.msra.mxu0 0.0
    %1723 = vmatprep.subr.mxu0 0.0
    %1724 = vmatpush1.msra.mxu0 0.0
    %1725 = vmatprep.subr.mxu0 0.0
    %1726 = vmatpush1.msra.mxu0 0.0
    %1727 = vmatprep.subr.mxu0 0.0
    %1728 = vmatpush1.msra.mxu0 0.0
    %1729 = vmatprep.subr.mxu0 0.0
    %1730 = vmatpush1.msra.mxu0 0.0
    %1731 = vmatprep.subr.mxu0 0.0
    %1732 = vmatpush1.msra.mxu0 0.0
    %1733 = vmatprep.subr.mxu0 0.0
    %1734 = vmatpush1.msra.mxu0 0.0
    %1735 = vmatprep.subr.mxu0 0.0
    %1736 = vmatpush1.msra.mxu0 0.0
    %1737 = vmatprep.subr.mxu0 0.0
    %1738 = vmatpush1.msra.mxu0 0.0
    %1739 = vmatprep.subr.mxu0 0.0
    %1740 = vmatpush1.msra.mxu0 0.0
    %1741 = vmatprep.subr.mxu0 0.0
    %1742 = vmatpush1.msra.mxu0 0.0
    %1743 = vmatprep.subr.mxu0 0.0
    %1744 = vmatpush1.msra.mxu0 0.0
    %1745 = vmatprep.subr.mxu0 0.0
    %1746 = vmatpush1.msra.mxu0 0.0
    %1747 = vmatprep.mubr.f32.mxu0 0.0
    %1748 = vmatmul.mubr.f32.gmra.mrb[0].mxu0 %v1682
    %v1749 = vpop.f32.mrb[0].mxu0
    %v1750 = vadd.f32 0.0, %v1749
    %v1751 = vpop.f32.mrb[0].mxu0
    %v1752 = vadd.f32 0.0, %v1751
    %1753 = vdwg.mxu0
    %v1754 = vadd.f32 %v1750, %v125
    %v1755 = vadd.f32 %v1752, %v129
    %v1756 = vxor.u32 %v1754, 2147483648
    %v1757 = vxor.u32 %v1755, 2147483648
    %v1758 = vmul.f32 %v1756, 1.442695
    %v1759 = vpow.pop %v1758
    %v1760 = vmul.f32 %v1757, 1.442695
    %v1761 = vpow.pop %v1760
    %v1762 = vadd.f32 %v1759, 1.0
    %v1763 = vadd.f32 %v1761, 1.0
    %v1764 = vrcp.pop %v1762
    %v1765 = vmul.f32 1.0, %v1764
    %v1766 = vrcp.pop %v1763
    %v1767 = vmul.f32 1.0, %v1766
    %v1768 = vtanh.pop %v1755
    %v1769 = vmul.f32 %v1765, %v1634
    %1771 = vrot.lane.b32.xlu0 %v1768, 64
    %v1772 = vpop.permute.xlu0 %1771
    %v1774 = vmul.f32 %v1765, %v1772
    %1776 = vrot.lane.b32.xlu0 %v1774, 64
    %v1777 = vpop.permute.xlu0 %1776
    %v1779 = vadd.f32 %v1769, %v1777
    %v1780 = vtanh.pop %v1779
    %1782 = vrot.lane.b32.xlu0 %v1780, 64
    %v1783 = vpop.permute.xlu0 %1782
    %v1785 = vmul.f32 %v1767, %v1783
    %1787 = vrot.lane.b32.xlu0 %v1785, 64
    %v1788 = vpop.permute.xlu0 %1787
    %1790 = vst.msk [vmem:[#allocation2] sm:$0xff] %vm348, %v1788
    %v1791 = vld [vmem:[%s3] sm:$0xff]
    %v1792 = vld [vmem:[%s3 + $0x8] sm:$0xff]
    %v1793 = vld [vmem:[%s3 + $0x10] sm:$0xff]
    %v1794 = vld [vmem:[%s3 + $0x18] sm:$0xff]
    %v1795 = vld [vmem:[%s3 + $0x20] sm:$0xff]
    %v1796 = vld [vmem:[%s3 + $0x28] sm:$0xff]
    %v1797 = vld [vmem:[%s3 + $0x30] sm:$0xff]
    %v1798 = vld [vmem:[%s3 + $0x38] sm:$0xff]
    %v1799 = vld [vmem:[%s4] sm:$0x1]
    %v1801 = vlaneseq
    %v1802 = vshrl.u32 %v1801, 7
    %v1803 = vsub.s32 0, %v1802
    %v1804 = vrot.slane %v1799, %v1803
    %v1806 = vsel %vm167, %v1785, 0
    %1808 = vmatprep.subr.mxu0 0.0
    %1809 = vmatpush1.msra.mxu0 %v1791
    %1810 = vmatprep.subr.mxu0 0.0
    %1811 = vmatpush1.msra.mxu0 %v1792
    %1812 = vmatprep.subr.mxu0 0.0
    %1813 = vmatpush1.msra.mxu0 %v1793
    %1814 = vmatprep.subr.mxu0 0.0
    %1815 = vmatpush1.msra.mxu0 %v1794
    %1816 = vmatprep.subr.mxu0 0.0
    %1817 = vmatpush1.msra.mxu0 %v1795
    %1818 = vmatprep.subr.mxu0 0.0
    %1819 = vmatpush1.msra.mxu0 %v1796
    %1820 = vmatprep.subr.mxu0 0.0
    %1821 = vmatpush1.msra.mxu0 %v1797
    %1822 = vmatprep.subr.mxu0 0.0
    %1823 = vmatpush1.msra.mxu0 %v1798
    %1824 = vmatprep.subr.mxu0 0.0
    %1825 = vmatpush1.msra.mxu0 0.0
    %1826 = vmatprep.subr.mxu0 0.0
    %1827 = vmatpush1.msra.mxu0 0.0
    %1828 = vmatprep.subr.mxu0 0.0
    %1829 = vmatpush1.msra.mxu0 0.0
    %1830 = vmatprep.subr.mxu0 0.0
    %1831 = vmatpush1.msra.mxu0 0.0
    %1832 = vmatprep.subr.mxu0 0.0
    %1833 = vmatpush1.msra.mxu0 0.0
    %1834 = vmatprep.subr.mxu0 0.0
    %1835 = vmatpush1.msra.mxu0 0.0
    %1836 = vmatprep.subr.mxu0 0.0
    %1837 = vmatpush1.msra.mxu0 0.0
    %1838 = vmatprep.subr.mxu0 0.0
    %1839 = vmatpush1.msra.mxu0 0.0
    %1840 = vmatprep.subr.mxu0 0.0
    %1841 = vmatpush1.msra.mxu0 0.0
    %1842 = vmatprep.subr.mxu0 0.0
    %1843 = vmatpush1.msra.mxu0 0.0
    %1844 = vmatprep.subr.mxu0 0.0
    %1845 = vmatpush1.msra.mxu0 0.0
    %1846 = vmatprep.subr.mxu0 0.0
    %1847 = vmatpush1.msra.mxu0 0.0
    %1848 = vmatprep.subr.mxu0 0.0
    %1849 = vmatpush1.msra.mxu0 0.0
    %1850 = vmatprep.subr.mxu0 0.0
    %1851 = vmatpush1.msra.mxu0 0.0
    %1852 = vmatprep.subr.mxu0 0.0
    %1853 = vmatpush1.msra.mxu0 0.0
    %1854 = vmatprep.subr.mxu0 0.0
    %1855 = vmatpush1.msra.mxu0 0.0
    %1856 = vmatprep.subr.mxu0 0.0
    %1857 = vmatpush1.msra.mxu0 0.0
    %1858 = vmatprep.subr.mxu0 0.0
    %1859 = vmatpush1.msra.mxu0 0.0
    %1860 = vmatprep.subr.mxu0 0.0
    %1861 = vmatpush1.msra.mxu0 0.0
    %1862 = vmatprep.subr.mxu0 0.0
    %1863 = vmatpush1.msra.mxu0 0.0
    %1864 = vmatprep.subr.mxu0 0.0
    %1865 = vmatpush1.msra.mxu0 0.0
    %1866 = vmatprep.subr.mxu0 0.0
    %1867 = vmatpush1.msra.mxu0 0.0
    %1868 = vmatprep.subr.mxu0 0.0
    %1869 = vmatpush1.msra.mxu0 0.0
    %1870 = vmatprep.subr.mxu0 0.0
    %1871 = vmatpush1.msra.mxu0 0.0
    %1872 = vmatprep.mubr.f32.mxu0 0.0
    %1873 = vmatmul.mubr.f32.gmra.mrb[0].mxu0 %v1806
    %v1874 = vpop.f32.mrb[0].mxu0
    %v1875 = vadd.f32 %v1804, %v1874
    %v1876 = vpop.f32.mrb[0].mxu0
    %1877 = vdwg.mxu0
    %v1878 = vmax.f32 %v1875, 0.0
    %v1879 = vld [vmem:[%s5] sm:$0x1]
    %v1881 = vlaneseq
    %v1882 = vshrl.u32 %v1881, 7
    %v1883 = vsub.s32 0, %v1882
    %v1884 = vrot.slane %v1879, %v1883
    %v1886 = vmul.f32 %v1878, %v1884
    %vm1887 = vcmask 261120
    %v1888 = vsel %vm1887, %v1886, 0.0
    %1889 = vadd.xlane.f32.xlu0 %v1888
    %v1890 = vpop.xlane.xlu0 %1889
    %v1891 = vld [vmem:[#allocation3] sm:$0x1]
    %v1893 = vlaneseq
    %v1894 = vshrl.u32 %v1893, 7
    %v1895 = vsub.s32 0, %v1894
    %v1896 = vrot.slane %v1891, %v1895
    %v1898 = vadd.f32 %v1890, %v1896
    %vm1899 = vcmask 7168
    %1900 = vst.msk [vmem:[%s7] sm:$0xff] %vm1899, %v1898
    // Predicated region
    $region38: #{tpu_custom_call.1} parent=1 // pred_check
      _
    $region39: #{tpu_custom_call.1} parent=1 // pred_check_branch
      %1902 = sbr.rel (0) target = $region41
    $region40: #{tpu_custom_call.1} parent=1 // pred_region
      _
    $region41: #{tpu_custom_call.1} parent=1 // pred_fallthru
      _
    // Predicated region
    $region42: #{tpu_custom_call.1} parent=1 // pred_check
      _
    $region43: #{tpu_custom_call.1} parent=1 // pred_check_branch
      %1904 = sbr.rel (0) target = $region45
    $region44: #{tpu_custom_call.1} parent=1 // pred_region
      _
    $region45: #{tpu_custom_call.1} parent=1 // pred_fallthru
      _
    %1905 = vsyncpa [#allocation5], 1
    %1906 = vsyncpa [#allocation7], 1

</llo_original>
